<compile_context>
chip_gen: v6e
topology: v6e:2x2x1
jax: 0.10.0
libtpu: 0.0.40
codegen_flags: <defaults>
</compile_context>

<pallas_src>
import jax
import jax.numpy as jnp
from jax.experimental import pallas as pl
from jax.experimental.pallas import tpu as pltpu


def _lpp_kernel_single_k(feats_ref, w_ref, b_ref, alpha_ref, tv_ref, out_ref):
    # Whole-D reduction in one MXU call; fused epilogue; direct lane-dense store.
    acc = jnp.dot(feats_ref[...], w_ref[...], preferred_element_type=jnp.float32)
    fused = acc + b_ref[...] + (alpha_ref[...] * (1.0 / 100.0)) * tv_ref[...]
    out_ref[...] = fused.astype(out_ref.dtype)


def _lpp_kernel_multi_k(feats_ref, w_ref, b_ref, alpha_ref, tv_ref, out_ref, acc_ref):
    k = pl.program_id(2)

    @pl.when(k == 0)
    def _():
        acc_ref[...] = jnp.zeros_like(acc_ref)

    acc_ref[...] += jnp.dot(feats_ref[...], w_ref[...],
                            preferred_element_type=jnp.float32)

    @pl.when(k == pl.num_programs(2) - 1)
    def _():
        fused = acc_ref[...] + b_ref[...] + (alpha_ref[...] * (1.0 / 100.0)) * tv_ref[...]
        out_ref[...] = fused.astype(out_ref.dtype)


def _round_up(x, m):
    return (x + m - 1) // m * m


def _maybe_pad(x, target_shape):
    if tuple(x.shape) == tuple(target_shape):
        return x  # no padded copy (important for the big (D, C) weight)
    return jnp.pad(x, [(0, t - s) for s, t in zip(x.shape, target_shape)])


def lpp_forward(feats, w, b, alpha_vec, tv_logits, *,
                tm=256, tn=1024, tk=1024, weights_dtype=None):
    """feats: (B, D), w: (D, C), b: (1, C), alpha_vec: (1, C), tv_logits: (B, C)."""
    B, D = feats.shape
    C = w.shape[1]
    out_dtype = feats.dtype

    # Optional low-precision streaming of the dominant HBM traffic (W and feats);
    # accumulation stays f32 on the MXU.
    if weights_dtype is not None:
        w = w.astype(weights_dtype)
        feats = feats.astype(weights_dtype)

    itm = jnp.dtype(feats.dtype).itemsize
    itw = jnp.dtype(w.dtype).itemsize

    # Tile clamps: sublane-aligned TM (8 for f32, 16 for bf16), lane-dense TN/TK.
    sub_m = max(8, 32 // itm)
    tm = min(tm, _round_up(B, sub_m))
    tn = min(tn, _round_up(C, 128))

    # Collapse the reduction axis when D fits a single tile (typical CLIP D<=2048).
    d_full = _round_up(D, 128)
    tk = d_full if d_full <= 2048 else min(tk, d_full)

    # Guarantee >=2 parallel grid steps so both v7x TensorCores get work.
    def _parallel_steps(_tn):
        return (_round_up(B, tm) // tm) * (_round_up(C, _tn) // _tn)
    while _parallel_steps(tn) < 2 and tn > 128:
        tn //= 2

    Bp, Cp, Dp = _round_up(B, tm), _round_up(C, tn), _round_up(D, tk)

    feats_p = _maybe_pad(feats, (Bp, Dp))
    w_p = _maybe_pad(w, (Dp, Cp))
    b_p = _maybe_pad(b, (1, Cp))
    a_p = _maybe_pad(alpha_vec, (1, Cp))
    tv_p = _maybe_pad(tv_logits, (Bp, Cp))

    single_k = (Dp == tk)

    if single_k:
        grid = (Bp // tm, Cp // tn)
        in_specs = [
            pl.BlockSpec((tm, tk), lambda i, j: (i, 0)),   # feats
            pl.BlockSpec((tk, tn), lambda i, j: (0, j)),   # adapter weight
            pl.BlockSpec((1, tn), lambda i, j: (0, j)),    # adapter bias
            pl.BlockSpec((1, tn), lambda i, j: (0, j)),    # alpha_vec
            pl.BlockSpec((tm, tn), lambda i, j: (i, j)),   # tv_logits
        ]
        out_specs = pl.BlockSpec((tm, tn), lambda i, j: (i, j))
        scratch_shapes = []
        kernel = _lpp_kernel_single_k
        dim_sem = ("parallel", "parallel")
    else:
        grid = (Bp // tm, Cp // tn, Dp // tk)
        in_specs = [
            pl.BlockSpec((tm, tk), lambda i, j, k: (i, k)),
            pl.BlockSpec((tk, tn), lambda i, j, k: (k, j)),
            pl.BlockSpec((1, tn), lambda i, j, k: (0, j)),
            pl.BlockSpec((1, tn), lambda i, j, k: (0, j)),
            pl.BlockSpec((tm, tn), lambda i, j, k: (i, j)),
        ]
        out_specs = pl.BlockSpec((tm, tn), lambda i, j, k: (i, j))
        scratch_shapes = [pltpu.VMEM((tm, tn), jnp.float32)]
        kernel = _lpp_kernel_multi_k
        dim_sem = ("parallel", "parallel", "arbitrary")

    # VMEM budget: double-buffered tiles + (optional) accumulator, with headroom.
    est_vmem = 2 * (tm * tk * itm + tk * tn * itw + 2 * tm * tn * 4 + 2 * tn * 4)
    if not single_k:
        est_vmem += tm * tn * 4
    vmem_limit = int(min(64 << 20, max(32 << 20, est_vmem + (8 << 20))))

    cost = pl.CostEstimate(
        flops=2 * B * D * C,
        transcendentals=0,
        bytes_accessed=(B * D * itm + D * C * itw + B * C * 4 + B * C * 4 + 2 * C * 4),
    )

    out_p = pl.pallas_call(
        kernel,
        out_shape=jax.ShapeDtypeStruct((Bp, Cp), jnp.float32),
        grid_spec=pltpu.PrefetchScalarGridSpec(
            num_scalar_prefetch=0,
            grid=grid,
            in_specs=in_specs,
            out_specs=out_specs,
            scratch_shapes=scratch_shapes,
        ),
        compiler_params=pltpu.CompilerParams(
            dimension_semantics=dim_sem,
            vmem_limit_bytes=vmem_limit,
        ),
        cost_estimate=cost,
    )(feats_p, w_p, b_p, a_p, tv_p)

    out = out_p[:B, :C]
    return out.astype(out_dtype) if out_dtype != jnp.float32 and weights_dtype is None else out


if __name__ == "__main__":
    # Small, deterministic synthetic setup (stands in for init_lp outputs).
    B, D, C = 8, 1024, 1024   # batch, feature dim, num classes
    key = jax.random.PRNGKey(0)
    k_feat, k_tv, k_w, k_b, k_a = jax.random.split(key, 5)

    feats = jax.random.normal(k_feat, (B, D), jnp.float32)
    tv_logits = jax.random.normal(k_tv, (B, C), jnp.float32) * 10.0

    # Deterministic "adapter" (nn.Linear(D, C)) params and alpha_vec (1, C).
    w = jax.random.normal(k_w, (D, C), jnp.float32) * 0.02
    b = jax.random.normal(k_b, (1, C), jnp.float32) * 0.01
    alpha_vec = jnp.abs(jax.random.normal(k_a, (1, C), jnp.float32)) + 0.5

    # Pure-JAX reference of the exact PyTorch forward (high-precision matmul).
    vision_ref = jnp.dot(feats, w, precision=jax.lax.Precision.HIGHEST) + b
    ref = vision_ref + (jnp.ones((B, 1), jnp.float32) @ alpha_vec) * tv_logits / 100.0

    # f32 path.
    out = jax.block_until_ready(lpp_forward(feats, w, b, alpha_vec, tv_logits))
    assert out.shape == (B, C)
    assert jnp.allclose(out, ref, atol=5e-3, rtol=5e-3), float(jnp.max(jnp.abs(out - ref)))

    # bf16-streamed weights/feats (mem-bound win), f32 accumulation; looser tolerance.
    out_bf16 = jax.block_until_ready(
        lpp_forward(feats, w, b, alpha_vec, tv_logits, weights_dtype=jnp.bfloat16))
    assert out_bf16.shape == (B, C)
    assert jnp.allclose(out_bf16, ref, atol=5e-2, rtol=5e-2)

    print("KERNEL_OK")
</pallas_src>

<mosaic_0001>
module attributes {stable_mosaic.version = 11 : i64} {
  func.func @_lpp_kernel_single_k(%arg0: i32, %arg1: i32, %arg2: memref<8x1024xf32, #tpu.memory_space<vmem>>, %arg3: memref<1024x512xf32, #tpu.memory_space<vmem>>, %arg4: memref<1x512xf32, #tpu.memory_space<vmem>>, %arg5: memref<1x512xf32, #tpu.memory_space<vmem>>, %arg6: memref<8x512xf32, #tpu.memory_space<vmem>>, %arg7: memref<8x512xf32, #tpu.memory_space<vmem>>) attributes {dimension_semantics = [#tpu.dimension_semantics<parallel>, #tpu.dimension_semantics<parallel>], iteration_bounds = array<i64: 1, 2>, scalar_prefetch = 0 : i64, scratch_operands = 0 : i64, tpu.core_type = #tpu.core_type<tc>, window_params = [{transform_indices = @transform_0, window_bounds = array<i64: 8, 1024>}, {transform_indices = @transform_1, window_bounds = array<i64: 1024, 512>}, {transform_indices = @transform_2, window_bounds = array<i64: 1, 512>}, {transform_indices = @transform_3, window_bounds = array<i64: 1, 512>}, {transform_indices = @transform_4, window_bounds = array<i64: 8, 512>}, {transform_indices = @transform_5, window_bounds = array<i64: 8, 512>}]} {
    %c0 = arith.constant 0 : index
    %c0_0 = arith.constant 0 : index
    %0 = vector.load %arg2[%c0, %c0_0] : memref<8x1024xf32, #tpu.memory_space<vmem>>, vector<8x1024xf32>
    %c0_1 = arith.constant 0 : index
    %c0_2 = arith.constant 0 : index
    %1 = vector.load %arg3[%c0_1, %c0_2] : memref<1024x512xf32, #tpu.memory_space<vmem>>, vector<1024x512xf32>
    %cst = arith.constant dense<0.000000e+00> : vector<8x512xf32>
    %2 = tpu.matmul %0, %1, %cst {dimension_numbers = #tpu.dot_dimension_numbers<[1], [0], [0], [1], [0, 0, 1, 1], [], []>} : vector<8x1024xf32>, vector<1024x512xf32>, vector<8x512xf32> -> vector<8x512xf32>
    %c0_3 = arith.constant 0 : index
    %c0_4 = arith.constant 0 : index
    %3 = vector.load %arg4[%c0_3, %c0_4] : memref<1x512xf32, #tpu.memory_space<vmem>>, vector<1x512xf32>
    %4 = vector.broadcast %3 : vector<1x512xf32> to vector<8x512xf32>
    %5 = arith.addf %2, %4 : vector<8x512xf32>
    %c0_5 = arith.constant 0 : index
    %c0_6 = arith.constant 0 : index
    %6 = vector.load %arg5[%c0_5, %c0_6] : memref<1x512xf32, #tpu.memory_space<vmem>>, vector<1x512xf32>
    %cst_7 = arith.constant 0.00999999977 : f32
    %7 = vector.broadcast %cst_7 : f32 to vector<1x512xf32>
    %8 = arith.mulf %6, %7 : vector<1x512xf32>
    %c0_8 = arith.constant 0 : index
    %c0_9 = arith.constant 0 : index
    %9 = vector.load %arg6[%c0_8, %c0_9] : memref<8x512xf32, #tpu.memory_space<vmem>>, vector<8x512xf32>
    %10 = vector.broadcast %8 : vector<1x512xf32> to vector<8x512xf32>
    %11 = arith.mulf %10, %9 : vector<8x512xf32>
    %12 = arith.addf %5, %11 : vector<8x512xf32>
    %c0_10 = arith.constant 0 : index
    %c0_11 = arith.constant 0 : index
    %13 = vector.load %arg7[%c0_10, %c0_11] : memref<8x512xf32, #tpu.memory_space<vmem>>, vector<8x512xf32>
    tpu.vector_store %arg7[%c0_10, %c0_11], %12 {strides = array<i32>} : memref<8x512xf32, #tpu.memory_space<vmem>>, vector<8x512xf32>,
    return
  }
  func.func @transform_0(%arg0: i32, %arg1: i32) -> (i32, i32) {
    %c0_i32 = arith.constant 0 : i32
    %c0_i32_0 = arith.constant 0 : i32
    return %arg0, %c0_i32 : i32, i32
  }
  func.func @transform_1(%arg0: i32, %arg1: i32) -> (i32, i32) {
    %c0_i32 = arith.constant 0 : i32
    %c0_i32_0 = arith.constant 0 : i32
    return %c0_i32, %arg1 : i32, i32
  }
  func.func @transform_2(%arg0: i32, %arg1: i32) -> (i32, i32) {
    %c0_i32 = arith.constant 0 : i32
    %c0_i32_0 = arith.constant 0 : i32
    return %c0_i32, %arg1 : i32, i32
  }
  func.func @transform_3(%arg0: i32, %arg1: i32) -> (i32, i32) {
    %c0_i32 = arith.constant 0 : i32
    %c0_i32_0 = arith.constant 0 : i32
    return %c0_i32, %arg1 : i32, i32
  }
  func.func @transform_4(%arg0: i32, %arg1: i32) -> (i32, i32) {
    %c0_i32 = arith.constant 0 : i32
    return %arg0, %arg1 : i32, i32
  }
  func.func @transform_5(%arg0: i32, %arg1: i32) -> (i32, i32) {
    %c0_i32 = arith.constant 0 : i32
    return %arg0, %arg1 : i32, i32
  }
}

</mosaic_0001>

<llo_original>
// kernel: tpu_custom_call.1
$region0: #{tpu_custom_call.1}
  #allocation0 [shape = 'u32[]', space=smem, size = 0x4, offset = 0x4, fixed_abs, tag = 'smem constant byte address 0x4 - core index']
  #allocation1 [shape = 'u32[144,128]{1,0:T(1,128)}', space=vmem, size = 0x12000, scoped, tag = 'internal scratch']
  %s0 = inlined_call_operand.hbm [shape: f32[8,1024], index: 0, kind: input, shape index: {}]
  %s1 = inlined_call_operand.hbm [shape: f32[1024,1024], index: 1, kind: input, shape index: {}]
  %s2 = inlined_call_operand.hbm [shape: f32[1,1024], index: 2, kind: input, shape index: {}]
  %s3 = inlined_call_operand.hbm [shape: f32[1,1024], index: 3, kind: input, shape index: {}]
  %s4 = inlined_call_operand.hbm [shape: f32[8,1024], index: 4, kind: input, shape index: {}]
  %s5 = inlined_call_operand.hbm [shape: f32[8,1024], index: 5, kind: output, shape index: {}]
  %s6 = sld [smem:[#allocation0]]
  $region73: #{tpu_custom_call.1} parent=0
    _
  %s8 = ssub.s32 1, %s6
  %s9 = scalar_select 0, %s8, %s6
  $region1: #{tpu_custom_call.1} parent=0
    #allocation2 [shape = 'u8[32768]{0}', space=vmem, size = 0x8000, scoped, tag = 'input window, operand 0, single buffered']
    #allocation3 [shape = 's32[2]{0}', space=sflag, size = 0x8, scoped, tag = 'scoped memory for tpu_custom_call.1']
    #allocation4 [shape = 's32[2]{0}', space=sflag, size = 0x8, scoped, tag = 'scoped memory for tpu_custom_call.1']
    #allocation5 [shape = 'u8[4194304]{0}', space=vmem, size = 0x400000, scoped, tag = 'input window, operand 1']
    #allocation6 [shape = 's32[2]{0}', space=sflag, size = 0x8, scoped, tag = 'scoped memory for tpu_custom_call.1']
    #allocation7 [shape = 'u8[4096]{0}', space=vmem, size = 0x1000, scoped, tag = 'input window, operand 2']
    #allocation8 [shape = 'u8[4096]{0}', space=vmem, size = 0x1000, scoped, tag = 'input window, operand 3']
    #allocation9 [shape = 's32[2]{0}', space=sflag, size = 0x8, scoped, tag = 'scoped memory for tpu_custom_call.1']
    #allocation10 [shape = 'u8[32768]{0}', space=vmem, size = 0x8000, scoped, tag = 'input window, operand 4']
    #allocation11 [shape = 'u8[32768]{0}', space=vmem, size = 0x8000, scoped, tag = 'output window, operand 0']
    %10 = vsyncpa [#allocation3], 0
    %11 = vsyncpa [#allocation6], 0
    %s12 = scalar_lea.sflag [#allocation6], 1
    %13 = vsyncpa %s12, 0
    %14 = vsyncpa [#allocation9], 0
    %s15 = scalar_lea.sflag [#allocation9], 1
    %16 = vsyncpa %s15, 0
    %17 = vsyncpa [#allocation4], 0
    %s18 = scalar_lea.sflag [#allocation4], 1
    %19 = vsyncpa %s18, 0
    loop: start=0, step=1, limit=4
    $region2: #{tpu_custom_call.1} parent=1 // loop_pre_header
      _
    $region3: #{tpu_custom_call.1} parent=1 // loop_header
      %s21 = sphi 0, %s25
      %p22 = scmp.ge.s32.totalorder %s21, 4
      %s28 = sphi 0, %s40
      %s29 = sphi 0, %s36
      %s30 = sphi 0, %s28
      %s31 = sphi 0, %s29
      %s32 = sphi 0, %s30
      %s33 = sphi 0, %s31
      %s43 = sphi 0, %s45
      %s46 = sphi 0, %s43
      %s47 = sphi 0, %s46
      %s63 = sphi 0, %s47
      %s69 = sphi 0, %s71
      %s72 = sphi 0, %s69
      %s73 = sphi 0, %s72
      %s89 = sphi 0, %s73
      %s95 = sphi 0, %s97
      %s98 = sphi 0, %s95
      %s99 = sphi 0, %s98
      %s115 = sphi 0, %s99
      %s121 = sphi 0, %s123
      %s124 = sphi 0, %s121
      %s125 = sphi 0, %s124
      %s141 = sphi 0, %s125
      %s149 = sphi 0, %s151
      %s152 = sphi 0, %s149
      %s153 = sphi 0, %s152
      %s169 = sphi 0, %s153
      %s177 = sphi 0, %s179
      %s180 = sphi 0, %s177
      %s181 = sphi 0, %s180
      %s197 = sphi 0, %s181
    $region4: #{tpu_custom_call.1} parent=1 // loop_header_branch
      %24 = sbr.rel (%p22) target = $region8
    $region5: #{tpu_custom_call.1} parent=1 // loop_body
      %s26 = ssub.s32 %s21, 1
      %s27 = ssub.s32 %s21, 2
      %s34 = sadd.s32 1, %s29
      %p35 = scmp.ge.s32.totalorder %s34, 2
      %s36 = scalar_select %p35, 0, %s34
      %s37 = sadd.s32 1, %s28
      %s38 = scalar_select %p35, %s37, %s28
      %p39 = scmp.ge.s32.totalorder %s38, 1
      %s40 = scalar_select %p39, 0, %s38
      %s41 = ssub.s32 %s28, %s40
      %p42 = scmp.eq.s32.totalorder %s41, 0
      %s44 = sadd.s32 %s43, 1
      %s45 = scalar_select %p42, %s43, %s44
      %p48 = pneg %p42
      %p49 = scmp.eq.s32.totalorder %s21, 1
      %p50 = por %p48, %p49
      %p51 = scmp.ne.s32.totalorder %s43, %s46
      %p52 = scmp.eq.s32.totalorder %s21, 0
      %p53 = por %p51, %p52
      %p54 = scmp.ne.s32.totalorder %s43, %s46
      %p55 = scmp.eq.s32.totalorder %s26, 1
      %p56 = por %p54, %p55
      %p57 = scmp.ne.s32.totalorder %s46, %s47
      %p58 = scmp.eq.s32.totalorder %s26, 0
      %p59 = por %p57, %p58
      %p60 = scmp.ne.s32.totalorder %s46, %s47
      %p61 = scmp.eq.s32.totalorder %s27, 1
      %p62 = por %p60, %p61
      %p64 = scmp.ne.s32.totalorder %s47, %s63
      %p65 = scmp.eq.s32.totalorder %s27, 0
      %p66 = por %p64, %p65
      %s67 = ssub.s32 %s29, %s36
      %p68 = scmp.eq.s32.totalorder %s67, 0
      %s70 = sadd.s32 %s69, 1
      %s71 = scalar_select %p68, %s69, %s70
      %p74 = pneg %p68
      %p75 = scmp.eq.s32.totalorder %s21, 1
      %p76 = por %p74, %p75
      %p77 = scmp.ne.s32.totalorder %s69, %s72
      %p78 = scmp.eq.s32.totalorder %s21, 0
      %p79 = por %p77, %p78
      %p80 = scmp.ne.s32.totalorder %s69, %s72
      %p81 = scmp.eq.s32.totalorder %s26, 1
      %p82 = por %p80, %p81
      %p83 = scmp.ne.s32.totalorder %s72, %s73
      %p84 = scmp.eq.s32.totalorder %s26, 0
      %p85 = por %p83, %p84
      %p86 = scmp.ne.s32.totalorder %s72, %s73
      %p87 = scmp.eq.s32.totalorder %s27, 1
      %p88 = por %p86, %p87
      %p90 = scmp.ne.s32.totalorder %s73, %s89
      %p91 = scmp.eq.s32.totalorder %s27, 0
      %p92 = por %p90, %p91
      %s93 = ssub.s32 %s29, %s36
      %p94 = scmp.eq.s32.totalorder %s93, 0
      %s96 = sadd.s32 %s95, 1
      %s97 = scalar_select %p94, %s95, %s96
      %p100 = pneg %p94
      %p101 = scmp.eq.s32.totalorder %s21, 1
      %p102 = por %p100, %p101
      %p103 = scmp.ne.s32.totalorder %s95, %s98
      %p104 = scmp.eq.s32.totalorder %s21, 0
      %p105 = por %p103, %p104
      %p106 = scmp.ne.s32.totalorder %s95, %s98
      %p107 = scmp.eq.s32.totalorder %s26, 1
      %p108 = por %p106, %p107
      %p109 = scmp.ne.s32.totalorder %s98, %s99
      %p110 = scmp.eq.s32.totalorder %s26, 0
      %p111 = por %p109, %p110
      %p112 = scmp.ne.s32.totalorder %s98, %s99
      %p113 = scmp.eq.s32.totalorder %s27, 1
      %p114 = por %p112, %p113
      %p116 = scmp.ne.s32.totalorder %s99, %s115
      %p117 = scmp.eq.s32.totalorder %s27, 0
      %p118 = por %p116, %p117
      %s119 = ssub.s32 %s29, %s36
      %p120 = scmp.eq.s32.totalorder %s119, 0
      %s122 = sadd.s32 %s121, 1
      %s123 = scalar_select %p120, %s121, %s122
      %p126 = pneg %p120
      %p127 = scmp.eq.s32.totalorder %s21, 1
      %p128 = por %p126, %p127
      %p129 = scmp.ne.s32.totalorder %s121, %s124
      %p130 = scmp.eq.s32.totalorder %s21, 0
      %p131 = por %p129, %p130
      %p132 = scmp.ne.s32.totalorder %s121, %s124
      %p133 = scmp.eq.s32.totalorder %s26, 1
      %p134 = por %p132, %p133
      %p135 = scmp.ne.s32.totalorder %s124, %s125
      %p136 = scmp.eq.s32.totalorder %s26, 0
      %p137 = por %p135, %p136
      %p138 = scmp.ne.s32.totalorder %s124, %s125
      %p139 = scmp.eq.s32.totalorder %s27, 1
      %p140 = por %p138, %p139
      %p142 = scmp.ne.s32.totalorder %s125, %s141
      %p143 = scmp.eq.s32.totalorder %s27, 0
      %p144 = por %p142, %p143
      %s145 = ssub.s32 %s28, %s40
      %s146 = ssub.s32 %s29, %s36
      %s147 = sor.u32 %s145, %s146
      %p148 = scmp.eq.s32.totalorder %s147, 0
      %s150 = sadd.s32 %s149, 1
      %s151 = scalar_select %p148, %s149, %s150
      %p154 = pneg %p148
      %p155 = scmp.eq.s32.totalorder %s21, 1
      %p156 = por %p154, %p155
      %p157 = scmp.ne.s32.totalorder %s149, %s152
      %p158 = scmp.eq.s32.totalorder %s21, 0
      %p159 = por %p157, %p158
      %p160 = scmp.ne.s32.totalorder %s149, %s152
      %p161 = scmp.eq.s32.totalorder %s26, 1
      %p162 = por %p160, %p161
      %p163 = scmp.ne.s32.totalorder %s152, %s153
      %p164 = scmp.eq.s32.totalorder %s26, 0
      %p165 = por %p163, %p164
      %p166 = scmp.ne.s32.totalorder %s152, %s153
      %p167 = scmp.eq.s32.totalorder %s27, 1
      %p168 = por %p166, %p167
      %p170 = scmp.ne.s32.totalorder %s153, %s169
      %p171 = scmp.eq.s32.totalorder %s27, 0
      %p172 = por %p170, %p171
      %s173 = ssub.s32 %s28, %s40
      %s174 = ssub.s32 %s29, %s36
      %s175 = sor.u32 %s173, %s174
      %p176 = scmp.eq.s32.totalorder %s175, 0
      %s178 = sadd.s32 %s177, 1
      %s179 = scalar_select %p176, %s177, %s178
      %p182 = pneg %p176
      %p183 = scmp.eq.s32.totalorder %s21, 1
      %p184 = por %p182, %p183
      %p185 = scmp.ne.s32.totalorder %s177, %s180
      %p186 = scmp.eq.s32.totalorder %s21, 0
      %p187 = por %p185, %p186
      %p188 = scmp.ne.s32.totalorder %s177, %s180
      %p189 = scmp.eq.s32.totalorder %s26, 1
      %p190 = por %p188, %p189
      %p191 = scmp.ne.s32.totalorder %s180, %s181
      %p192 = scmp.eq.s32.totalorder %s26, 0
      %p193 = por %p191, %p192
      %p194 = scmp.ne.s32.totalorder %s180, %s181
      %p195 = scmp.eq.s32.totalorder %s27, 1
      %p196 = por %p194, %p195
      %p198 = scmp.ne.s32.totalorder %s181, %s197
      %p199 = scmp.eq.s32.totalorder %s27, 0
      %p200 = por %p198, %p199
      %p201 = scmp.le.s32.totalorder 1, %s21
      %p202 = scmp.lt.s32.totalorder %s21, 3
      %p203 = pnand %p201, %p202
      %p204 = pneg %p203
      // Predicated region
      $region9: #{tpu_custom_call.1} parent=5 // pred_check
        _
      $region10: #{tpu_custom_call.1} parent=5 // pred_check_branch
        %206 = sbr.rel (%p203) target = $region12
      $region11: #{tpu_custom_call.1} parent=5 // pred_region
        %s207 = ssub.s32 %s21, 1
        // Predicated region
        $region13: #{tpu_custom_call.1} parent=11 // pred_check
          %p208 = pneg %p59
        $region14: #{tpu_custom_call.1} parent=11 // pred_check_branch
          %210 = sbr.rel (%p208) target = $region16
        $region15: #{tpu_custom_call.1} parent=11 // pred_region
          %s212 = ssub.s32 1024, 1024
          %213 = vsyncadd [#allocation3], %s212
          %s214 = smul.addr %s30, 8
          %s215 = smul.addr %s214, 128
          %s216 = scalar_lea.hbm %s0, %s215
          %s218 = sshll.u32 [#allocation2], 4
          %s219 = int_to_ptr.vmem [resolvable:$true] %s218
          %221 = dma.hbm_to_vmem [thread:$0]  %s216, 1024, %s219, [#allocation3]
        $region16: #{tpu_custom_call.1} parent=11 // pred_fallthru
          _
      $region12: #{tpu_custom_call.1} parent=5 // pred_fallthru
        _
      %p222 = scmp.lt.s32.totalorder %s21, 2
      // Predicated region
      $region17: #{tpu_custom_call.1} parent=5 // pred_check
        %p223 = pneg %p222
      $region18: #{tpu_custom_call.1} parent=5 // pred_check_branch
        %225 = sbr.rel (%p223) target = $region20
      $region19: #{tpu_custom_call.1} parent=5 // pred_region
        // Predicated region
        $region21: #{tpu_custom_call.1} parent=19 // pred_check
          %p226 = pneg %p79
        $region22: #{tpu_custom_call.1} parent=19 // pred_check_branch
          %228 = sbr.rel (%p226) target = $region24
        $region23: #{tpu_custom_call.1} parent=19 // pred_region
          %s229 = sand.u32 %s21, 1
          %s230 = scalar_lea.sflag [#allocation6], %s229
          %s231 = sand.u32 %s69, 1
          %s232 = smul.addr %s231, 4096
          %s233 = scalar_lea.vmem [#allocation5], %s232
          %s234 = smul.u32 4, %s29
          %s236 = ssub.s32 65536, 65536
          %237 = vsyncadd %s230, %s236
          %s238 = smul.addr %s234, 128
          %s239 = scalar_lea.hbm %s1, %s238
          %s240 = sshll.u32 %s233, 4
          %s241 = int_to_ptr.vmem [resolvable:$true] %s240
          %246 = dma.hbm_to_vmem [thread:$0]  %s239, 65536, %s241, %s230, 1024, 512, 32
        $region24: #{tpu_custom_call.1} parent=19 // pred_fallthru
          _
        // Predicated region
        $region25: #{tpu_custom_call.1} parent=19 // pred_check
          %p247 = pneg %p105
        $region26: #{tpu_custom_call.1} parent=19 // pred_check_branch
          %249 = sbr.rel (%p247) target = $region28
        $region27: #{tpu_custom_call.1} parent=19 // pred_region
          %s250 = sand.u32 %s21, 1
          %s251 = scalar_lea.sflag [#allocation6], %s250
          %s252 = sand.u32 %s95, 1
          %s253 = smul.addr %s252, 4
          %s254 = scalar_lea.vmem [#allocation7], %s253
          %s255 = smul.u32 4, %s29
          %s257 = ssub.s32 64, 64
          %258 = vsyncadd %s251, %s257
          %s259 = smul.addr %s255, 16
          %s260 = scalar_lea.hbm %s2, %s259
          %s262 = sshll.u32 %s254, 4
          %s263 = int_to_ptr.vmem [resolvable:$true] %s262
          %265 = dma.hbm_to_vmem [thread:$0]  %s260, 64, %s263, %s251
        $region28: #{tpu_custom_call.1} parent=19 // pred_fallthru
          _
        // Predicated region
        $region29: #{tpu_custom_call.1} parent=19 // pred_check
          %p266 = pneg %p131
        $region30: #{tpu_custom_call.1} parent=19 // pred_check_branch
          %268 = sbr.rel (%p266) target = $region32
        $region31: #{tpu_custom_call.1} parent=19 // pred_region
          %s269 = sand.u32 %s21, 1
          %s270 = scalar_lea.sflag [#allocation9], %s269
          %s271 = sand.u32 %s121, 1
          %s272 = smul.addr %s271, 4
          %s273 = scalar_lea.vmem [#allocation8], %s272
          %s274 = smul.u32 4, %s29
          %s276 = ssub.s32 64, 64
          %277 = vsyncadd %s270, %s276
          %s278 = smul.addr %s274, 16
          %s279 = scalar_lea.hbm %s3, %s278
          %s281 = sshll.u32 %s273, 4
          %s282 = int_to_ptr.vmem [resolvable:$true] %s281
          %284 = dma.hbm_to_vmem [thread:$0]  %s279, 64, %s282, %s270
        $region32: #{tpu_custom_call.1} parent=19 // pred_fallthru
          _
        // Predicated region
        $region33: #{tpu_custom_call.1} parent=19 // pred_check
          %p285 = pneg %p159
        $region34: #{tpu_custom_call.1} parent=19 // pred_check_branch
          %287 = sbr.rel (%p285) target = $region36
        $region35: #{tpu_custom_call.1} parent=19 // pred_region
          %s288 = sand.u32 %s21, 1
          %s289 = scalar_lea.sflag [#allocation9], %s288
          %s290 = sand.u32 %s149, 1
          %s291 = smul.addr %s290, 32
          %s292 = scalar_lea.vmem [#allocation10], %s291
          %s293 = smul.u32 4, %s29
          %s295 = ssub.s32 512, 512
          %296 = vsyncadd %s289, %s295
          %s297 = smul.addr %s28, 8
          %s298 = sadd.s32 %s293, %s297
          %s299 = smul.addr %s298, 128
          %s300 = scalar_lea.hbm %s4, %s299
          %s302 = sshll.u32 %s292, 4
          %s303 = int_to_ptr.vmem [resolvable:$true] %s302
          %305 = dma.hbm_to_vmem [thread:$0]  %s300, 512, %s303, %s289
        $region36: #{tpu_custom_call.1} parent=19 // pred_fallthru
          _
      $region20: #{tpu_custom_call.1} parent=5 // pred_fallthru
        _
      %p306 = scmp.le.s32.totalorder 1, %s21
      %p307 = scmp.lt.s32.totalorder %s21, 3
      %p308 = pnand %p306, %p307
      %p309 = pneg %p308
      // Predicated region
      $region37: #{tpu_custom_call.1} parent=5 // pred_check
        _
      $region38: #{tpu_custom_call.1} parent=5 // pred_check_branch
        %311 = sbr.rel (%p308) target = $region40
      $region39: #{tpu_custom_call.1} parent=5 // pred_region
        %s312 = ssub.s32 %s21, 1
        // Predicated region
        $region41: #{tpu_custom_call.1} parent=39 // pred_check
          %p313 = pneg %p59
        $region42: #{tpu_custom_call.1} parent=39 // pred_check_branch
          %315 = sbr.rel (%p313) target = $region44
        $region43: #{tpu_custom_call.1} parent=39 // pred_region
          %316 = dma.done [#allocation3], 1024
        $region44: #{tpu_custom_call.1} parent=39 // pred_fallthru
          _
        %s317 = sand.u32 %s26, 1
        %s318 = scalar_lea.sflag [#allocation6], %s317
        %s319 = sand.u32 %s72, 1
        %s320 = smul.addr %s319, 4096
        %s321 = scalar_lea.vmem [#allocation5], %s320
        // Predicated region
        $region45: #{tpu_custom_call.1} parent=39 // pred_check
          %p322 = pneg %p85
        $region46: #{tpu_custom_call.1} parent=39 // pred_check_branch
          %324 = sbr.rel (%p322) target = $region48
        $region47: #{tpu_custom_call.1} parent=39 // pred_region
          %325 = dma.done %s318, 65536
        $region48: #{tpu_custom_call.1} parent=39 // pred_fallthru
          _
        %s326 = sand.u32 %s26, 1
        %s327 = scalar_lea.sflag [#allocation6], %s326
        %s328 = sand.u32 %s98, 1
        %s329 = smul.addr %s328, 4
        %s330 = scalar_lea.vmem [#allocation7], %s329
        // Predicated region
        $region49: #{tpu_custom_call.1} parent=39 // pred_check
          %p331 = pneg %p111
        $region50: #{tpu_custom_call.1} parent=39 // pred_check_branch
          %333 = sbr.rel (%p331) target = $region52
        $region51: #{tpu_custom_call.1} parent=39 // pred_region
          %334 = dma.done %s327, 64
        $region52: #{tpu_custom_call.1} parent=39 // pred_fallthru
          _
        %s335 = sand.u32 %s26, 1
        %s336 = scalar_lea.sflag [#allocation9], %s335
        %s337 = sand.u32 %s124, 1
        %s338 = smul.addr %s337, 4
        %s339 = scalar_lea.vmem [#allocation8], %s338
        // Predicated region
        $region53: #{tpu_custom_call.1} parent=39 // pred_check
          %p340 = pneg %p137
        $region54: #{tpu_custom_call.1} parent=39 // pred_check_branch
          %342 = sbr.rel (%p340) target = $region56
        $region55: #{tpu_custom_call.1} parent=39 // pred_region
          %343 = dma.done %s336, 64
        $region56: #{tpu_custom_call.1} parent=39 // pred_fallthru
          _
        %s344 = sand.u32 %s26, 1
        %s345 = scalar_lea.sflag [#allocation9], %s344
        %s346 = sand.u32 %s152, 1
        %s347 = smul.addr %s346, 32
        %s348 = scalar_lea.vmem [#allocation10], %s347
        // Predicated region
        $region57: #{tpu_custom_call.1} parent=39 // pred_check
          %p349 = pneg %p165
        $region58: #{tpu_custom_call.1} parent=39 // pred_check_branch
          %351 = sbr.rel (%p349) target = $region60
        $region59: #{tpu_custom_call.1} parent=39 // pred_region
          %352 = dma.done %s345, 512
        $region60: #{tpu_custom_call.1} parent=39 // pred_fallthru
          _
        %p353 = pneg %p59
        %p354 = pneg %p56
        %s355 = sand.u32 %s26, 1
        %s356 = scalar_lea.sflag [#allocation6], %s355
        %s357 = sand.u32 %s72, 1
        %s358 = smul.addr %s357, 4096
        %s359 = scalar_lea.vmem [#allocation5], %s358
        %p360 = pneg %p85
        %p361 = pneg %p82
        %s362 = sand.u32 %s26, 1
        %s363 = scalar_lea.sflag [#allocation6], %s362
        %s364 = sand.u32 %s98, 1
        %s365 = smul.addr %s364, 4
        %s366 = scalar_lea.vmem [#allocation7], %s365
        %p367 = pneg %p111
        %p368 = pneg %p108
        %s369 = sand.u32 %s26, 1
        %s370 = scalar_lea.sflag [#allocation9], %s369
        %s371 = sand.u32 %s124, 1
        %s372 = smul.addr %s371, 4
        %s373 = scalar_lea.vmem [#allocation8], %s372
        %p374 = pneg %p137
        %p375 = pneg %p134
        %s376 = sand.u32 %s26, 1
        %s377 = scalar_lea.sflag [#allocation9], %s376
        %s378 = sand.u32 %s152, 1
        %s379 = smul.addr %s378, 32
        %s380 = scalar_lea.vmem [#allocation10], %s379
        %p381 = pneg %p165
        %p382 = pneg %p162
        %p383 = pneg %p193
        %p384 = pneg %p190
        %s385 = sand.u32 %s180, 1
        %s386 = scalar_lea.sflag [#allocation4], %s385
        %s387 = sand.u32 %s180, 1
        %s388 = smul.addr %s387, 32
        %s389 = scalar_lea.vmem [#allocation11], %s388
        %s390 = smul.u32 4, %s31
        %s391 = smul.u32 4, %s31
        %s392 = smul.u32 4, %s31
        %s393 = smul.u32 4, %s31
        %s394 = smul.u32 4, %s31
        %v395 = vld [vmem:[#allocation2] sm:$0xff]
        %v396 = vld [vmem:[#allocation2 + $0x8] sm:$0xff]
        %v397 = vld [vmem:[#allocation2 + $0x10] sm:$0xff]
        %v398 = vld [vmem:[#allocation2 + $0x18] sm:$0xff]
        %v399 = vld [vmem:[#allocation2 + $0x20] sm:$0xff]
        %v400 = vld [vmem:[#allocation2 + $0x28] sm:$0xff]
        %v401 = vld [vmem:[#allocation2 + $0x30] sm:$0xff]
        %v402 = vld [vmem:[#allocation2 + $0x38] sm:$0xff]
        %v403 = vld [vmem:[%s321] sm:$0xff]
        %v404 = vld [vmem:[%s321 + $0x8] sm:$0xff]
        %v405 = vld [vmem:[%s321 + $0x10] sm:$0xff]
        %v406 = vld [vmem:[%s321 + $0x18] sm:$0xff]
        %v407 = vld [vmem:[%s321 + $0x20] sm:$0xff]
        %v408 = vld [vmem:[%s321 + $0x28] sm:$0xff]
        %v409 = vld [vmem:[%s321 + $0x30] sm:$0xff]
        %v410 = vld [vmem:[%s321 + $0x38] sm:$0xff]
        %v411 = vld [vmem:[%s321 + $0x40] sm:$0xff]
        %v412 = vld [vmem:[%s321 + $0x48] sm:$0xff]
        %v413 = vld [vmem:[%s321 + $0x50] sm:$0xff]
        %v414 = vld [vmem:[%s321 + $0x58] sm:$0xff]
        %v415 = vld [vmem:[%s321 + $0x60] sm:$0xff]
        %v416 = vld [vmem:[%s321 + $0x68] sm:$0xff]
        %v417 = vld [vmem:[%s321 + $0x70] sm:$0xff]
        %v418 = vld [vmem:[%s321 + $0x78] sm:$0xff]
        %v419 = vld [vmem:[%s321 + $0x80] sm:$0xff]
        %v420 = vld [vmem:[%s321 + $0x88] sm:$0xff]
        %v421 = vld [vmem:[%s321 + $0x90] sm:$0xff]
        %v422 = vld [vmem:[%s321 + $0x98] sm:$0xff]
        %v423 = vld [vmem:[%s321 + $0xa0] sm:$0xff]
        %v424 = vld [vmem:[%s321 + $0xa8] sm:$0xff]
        %v425 = vld [vmem:[%s321 + $0xb0] sm:$0xff]
        %v426 = vld [vmem:[%s321 + $0xb8] sm:$0xff]
        %v427 = vld [vmem:[%s321 + $0xc0] sm:$0xff]
        %v428 = vld [vmem:[%s321 + $0xc8] sm:$0xff]
        %v429 = vld [vmem:[%s321 + $0xd0] sm:$0xff]
        %v430 = vld [vmem:[%s321 + $0xd8] sm:$0xff]
        %v431 = vld [vmem:[%s321 + $0xe0] sm:$0xff]
        %v432 = vld [vmem:[%s321 + $0xe8] sm:$0xff]
        %v433 = vld [vmem:[%s321 + $0xf0] sm:$0xff]
        %v434 = vld [vmem:[%s321 + $0xf8] sm:$0xff]
        %v435 = vld [vmem:[%s321 + $0x100] sm:$0xff]
        %v436 = vld [vmem:[%s321 + $0x108] sm:$0xff]
        %v437 = vld [vmem:[%s321 + $0x110] sm:$0xff]
        %v438 = vld [vmem:[%s321 + $0x118] sm:$0xff]
        %v439 = vld [vmem:[%s321 + $0x120] sm:$0xff]
        %v440 = vld [vmem:[%s321 + $0x128] sm:$0xff]
        %v441 = vld [vmem:[%s321 + $0x130] sm:$0xff]
        %v442 = vld [vmem:[%s321 + $0x138] sm:$0xff]
        %v443 = vld [vmem:[%s321 + $0x140] sm:$0xff]
        %v444 = vld [vmem:[%s321 + $0x148] sm:$0xff]
        %v445 = vld [vmem:[%s321 + $0x150] sm:$0xff]
        %v446 = vld [vmem:[%s321 + $0x158] sm:$0xff]
        %v447 = vld [vmem:[%s321 + $0x160] sm:$0xff]
        %v448 = vld [vmem:[%s321 + $0x168] sm:$0xff]
        %v449 = vld [vmem:[%s321 + $0x170] sm:$0xff]
        %v450 = vld [vmem:[%s321 + $0x178] sm:$0xff]
        %v451 = vld [vmem:[%s321 + $0x180] sm:$0xff]
        %v452 = vld [vmem:[%s321 + $0x188] sm:$0xff]
        %v453 = vld [vmem:[%s321 + $0x190] sm:$0xff]
        %v454 = vld [vmem:[%s321 + $0x198] sm:$0xff]
        %v455 = vld [vmem:[%s321 + $0x1a0] sm:$0xff]
        %v456 = vld [vmem:[%s321 + $0x1a8] sm:$0xff]
        %v457 = vld [vmem:[%s321 + $0x1b0] sm:$0xff]
        %v458 = vld [vmem:[%s321 + $0x1b8] sm:$0xff]
        %v459 = vld [vmem:[%s321 + $0x1c0] sm:$0xff]
        %v460 = vld [vmem:[%s321 + $0x1c8] sm:$0xff]
        %v461 = vld [vmem:[%s321 + $0x1d0] sm:$0xff]
        %v462 = vld [vmem:[%s321 + $0x1d8] sm:$0xff]
        %v463 = vld [vmem:[%s321 + $0x1e0] sm:$0xff]
        %v464 = vld [vmem:[%s321 + $0x1e8] sm:$0xff]
        %v465 = vld [vmem:[%s321 + $0x1f0] sm:$0xff]
        %v466 = vld [vmem:[%s321 + $0x1f8] sm:$0xff]
        %v467 = vld [vmem:[%s321 + $0x200] sm:$0xff]
        %v468 = vld [vmem:[%s321 + $0x208] sm:$0xff]
        %v469 = vld [vmem:[%s321 + $0x210] sm:$0xff]
        %v470 = vld [vmem:[%s321 + $0x218] sm:$0xff]
        %v471 = vld [vmem:[%s321 + $0x220] sm:$0xff]
        %v472 = vld [vmem:[%s321 + $0x228] sm:$0xff]
        %v473 = vld [vmem:[%s321 + $0x230] sm:$0xff]
        %v474 = vld [vmem:[%s321 + $0x238] sm:$0xff]
        %v475 = vld [vmem:[%s321 + $0x240] sm:$0xff]
        %v476 = vld [vmem:[%s321 + $0x248] sm:$0xff]
        %v477 = vld [vmem:[%s321 + $0x250] sm:$0xff]
        %v478 = vld [vmem:[%s321 + $0x258] sm:$0xff]
        %v479 = vld [vmem:[%s321 + $0x260] sm:$0xff]
        %v480 = vld [vmem:[%s321 + $0x268] sm:$0xff]
        %v481 = vld [vmem:[%s321 + $0x270] sm:$0xff]
        %v482 = vld [vmem:[%s321 + $0x278] sm:$0xff]
        %v483 = vld [vmem:[%s321 + $0x280] sm:$0xff]
        %v484 = vld [vmem:[%s321 + $0x288] sm:$0xff]
        %v485 = vld [vmem:[%s321 + $0x290] sm:$0xff]
        %v486 = vld [vmem:[%s321 + $0x298] sm:$0xff]
        %v487 = vld [vmem:[%s321 + $0x2a0] sm:$0xff]
        %v488 = vld [vmem:[%s321 + $0x2a8] sm:$0xff]
        %v489 = vld [vmem:[%s321 + $0x2b0] sm:$0xff]
        %v490 = vld [vmem:[%s321 + $0x2b8] sm:$0xff]
        %v491 = vld [vmem:[%s321 + $0x2c0] sm:$0xff]
        %v492 = vld [vmem:[%s321 + $0x2c8] sm:$0xff]
        %v493 = vld [vmem:[%s321 + $0x2d0] sm:$0xff]
        %v494 = vld [vmem:[%s321 + $0x2d8] sm:$0xff]
        %v495 = vld [vmem:[%s321 + $0x2e0] sm:$0xff]
        %v496 = vld [vmem:[%s321 + $0x2e8] sm:$0xff]
        %v497 = vld [vmem:[%s321 + $0x2f0] sm:$0xff]
        %v498 = vld [vmem:[%s321 + $0x2f8] sm:$0xff]
        %v499 = vld [vmem:[%s321 + $0x300] sm:$0xff]
        %v500 = vld [vmem:[%s321 + $0x308] sm:$0xff]
        %v501 = vld [vmem:[%s321 + $0x310] sm:$0xff]
        %v502 = vld [vmem:[%s321 + $0x318] sm:$0xff]
        %v503 = vld [vmem:[%s321 + $0x320] sm:$0xff]
        %v504 = vld [vmem:[%s321 + $0x328] sm:$0xff]
        %v505 = vld [vmem:[%s321 + $0x330] sm:$0xff]
        %v506 = vld [vmem:[%s321 + $0x338] sm:$0xff]
        %v507 = vld [vmem:[%s321 + $0x340] sm:$0xff]
        %v508 = vld [vmem:[%s321 + $0x348] sm:$0xff]
        %v509 = vld [vmem:[%s321 + $0x350] sm:$0xff]
        %v510 = vld [vmem:[%s321 + $0x358] sm:$0xff]
        %v511 = vld [vmem:[%s321 + $0x360] sm:$0xff]
        %v512 = vld [vmem:[%s321 + $0x368] sm:$0xff]
        %v513 = vld [vmem:[%s321 + $0x370] sm:$0xff]
        %v514 = vld [vmem:[%s321 + $0x378] sm:$0xff]
        %v515 = vld [vmem:[%s321 + $0x380] sm:$0xff]
        %v516 = vld [vmem:[%s321 + $0x388] sm:$0xff]
        %v517 = vld [vmem:[%s321 + $0x390] sm:$0xff]
        %v518 = vld [vmem:[%s321 + $0x398] sm:$0xff]
        %v519 = vld [vmem:[%s321 + $0x3a0] sm:$0xff]
        %v520 = vld [vmem:[%s321 + $0x3a8] sm:$0xff]
        %v521 = vld [vmem:[%s321 + $0x3b0] sm:$0xff]
        %v522 = vld [vmem:[%s321 + $0x3b8] sm:$0xff]
        %v523 = vld [vmem:[%s321 + $0x3c0] sm:$0xff]
        %v524 = vld [vmem:[%s321 + $0x3c8] sm:$0xff]
        %v525 = vld [vmem:[%s321 + $0x3d0] sm:$0xff]
        %v526 = vld [vmem:[%s321 + $0x3d8] sm:$0xff]
        %v527 = vld [vmem:[%s321 + $0x3e0] sm:$0xff]
        %v528 = vld [vmem:[%s321 + $0x3e8] sm:$0xff]
        %v529 = vld [vmem:[%s321 + $0x3f0] sm:$0xff]
        %v530 = vld [vmem:[%s321 + $0x3f8] sm:$0xff]
        %v531 = vld [vmem:[%s321 + $0x400] sm:$0xff]
        %v532 = vld [vmem:[%s321 + $0x408] sm:$0xff]
        %v533 = vld [vmem:[%s321 + $0x410] sm:$0xff]
        %v534 = vld [vmem:[%s321 + $0x418] sm:$0xff]
        %v535 = vld [vmem:[%s321 + $0x420] sm:$0xff]
        %v536 = vld [vmem:[%s321 + $0x428] sm:$0xff]
        %v537 = vld [vmem:[%s321 + $0x430] sm:$0xff]
        %v538 = vld [vmem:[%s321 + $0x438] sm:$0xff]
        %v539 = vld [vmem:[%s321 + $0x440] sm:$0xff]
        %v540 = vld [vmem:[%s321 + $0x448] sm:$0xff]
        %v541 = vld [vmem:[%s321 + $0x450] sm:$0xff]
        %v542 = vld [vmem:[%s321 + $0x458] sm:$0xff]
        %v543 = vld [vmem:[%s321 + $0x460] sm:$0xff]
        %v544 = vld [vmem:[%s321 + $0x468] sm:$0xff]
        %v545 = vld [vmem:[%s321 + $0x470] sm:$0xff]
        %v546 = vld [vmem:[%s321 + $0x478] sm:$0xff]
        %v547 = vld [vmem:[%s321 + $0x480] sm:$0xff]
        %v548 = vld [vmem:[%s321 + $0x488] sm:$0xff]
        %v549 = vld [vmem:[%s321 + $0x490] sm:$0xff]
        %v550 = vld [vmem:[%s321 + $0x498] sm:$0xff]
        %v551 = vld [vmem:[%s321 + $0x4a0] sm:$0xff]
        %v552 = vld [vmem:[%s321 + $0x4a8] sm:$0xff]
        %v553 = vld [vmem:[%s321 + $0x4b0] sm:$0xff]
        %v554 = vld [vmem:[%s321 + $0x4b8] sm:$0xff]
        %v555 = vld [vmem:[%s321 + $0x4c0] sm:$0xff]
        %v556 = vld [vmem:[%s321 + $0x4c8] sm:$0xff]
        %v557 = vld [vmem:[%s321 + $0x4d0] sm:$0xff]
        %v558 = vld [vmem:[%s321 + $0x4d8] sm:$0xff]
        %v559 = vld [vmem:[%s321 + $0x4e0] sm:$0xff]
        %v560 = vld [vmem:[%s321 + $0x4e8] sm:$0xff]
        %v561 = vld [vmem:[%s321 + $0x4f0] sm:$0xff]
        %v562 = vld [vmem:[%s321 + $0x4f8] sm:$0xff]
        %v563 = vld [vmem:[%s321 + $0x500] sm:$0xff]
        %v564 = vld [vmem:[%s321 + $0x508] sm:$0xff]
        %v565 = vld [vmem:[%s321 + $0x510] sm:$0xff]
        %v566 = vld [vmem:[%s321 + $0x518] sm:$0xff]
        %v567 = vld [vmem:[%s321 + $0x520] sm:$0xff]
        %v568 = vld [vmem:[%s321 + $0x528] sm:$0xff]
        %v569 = vld [vmem:[%s321 + $0x530] sm:$0xff]
        %v570 = vld [vmem:[%s321 + $0x538] sm:$0xff]
        %v571 = vld [vmem:[%s321 + $0x540] sm:$0xff]
        %v572 = vld [vmem:[%s321 + $0x548] sm:$0xff]
        %v573 = vld [vmem:[%s321 + $0x550] sm:$0xff]
        %v574 = vld [vmem:[%s321 + $0x558] sm:$0xff]
        %v575 = vld [vmem:[%s321 + $0x560] sm:$0xff]
        %v576 = vld [vmem:[%s321 + $0x568] sm:$0xff]
        %v577 = vld [vmem:[%s321 + $0x570] sm:$0xff]
        %v578 = vld [vmem:[%s321 + $0x578] sm:$0xff]
        %v579 = vld [vmem:[%s321 + $0x580] sm:$0xff]
        %v580 = vld [vmem:[%s321 + $0x588] sm:$0xff]
        %v581 = vld [vmem:[%s321 + $0x590] sm:$0xff]
        %v582 = vld [vmem:[%s321 + $0x598] sm:$0xff]
        %v583 = vld [vmem:[%s321 + $0x5a0] sm:$0xff]
        %v584 = vld [vmem:[%s321 + $0x5a8] sm:$0xff]
        %v585 = vld [vmem:[%s321 + $0x5b0] sm:$0xff]
        %v586 = vld [vmem:[%s321 + $0x5b8] sm:$0xff]
        %v587 = vld [vmem:[%s321 + $0x5c0] sm:$0xff]
        %v588 = vld [vmem:[%s321 + $0x5c8] sm:$0xff]
        %v589 = vld [vmem:[%s321 + $0x5d0] sm:$0xff]
        %v590 = vld [vmem:[%s321 + $0x5d8] sm:$0xff]
        %v591 = vld [vmem:[%s321 + $0x5e0] sm:$0xff]
        %v592 = vld [vmem:[%s321 + $0x5e8] sm:$0xff]
        %v593 = vld [vmem:[%s321 + $0x5f0] sm:$0xff]
        %v594 = vld [vmem:[%s321 + $0x5f8] sm:$0xff]
        %v595 = vld [vmem:[%s321 + $0x600] sm:$0xff]
        %v596 = vld [vmem:[%s321 + $0x608] sm:$0xff]
        %v597 = vld [vmem:[%s321 + $0x610] sm:$0xff]
        %v598 = vld [vmem:[%s321 + $0x618] sm:$0xff]
        %v599 = vld [vmem:[%s321 + $0x620] sm:$0xff]
        %v600 = vld [vmem:[%s321 + $0x628] sm:$0xff]
        %v601 = vld [vmem:[%s321 + $0x630] sm:$0xff]
        %v602 = vld [vmem:[%s321 + $0x638] sm:$0xff]
        %v603 = vld [vmem:[%s321 + $0x640] sm:$0xff]
        %v604 = vld [vmem:[%s321 + $0x648] sm:$0xff]
        %v605 = vld [vmem:[%s321 + $0x650] sm:$0xff]
        %v606 = vld [vmem:[%s321 + $0x658] sm:$0xff]
        %v607 = vld [vmem:[%s321 + $0x660] sm:$0xff]
        %v608 = vld [vmem:[%s321 + $0x668] sm:$0xff]
        %v609 = vld [vmem:[%s321 + $0x670] sm:$0xff]
        %v610 = vld [vmem:[%s321 + $0x678] sm:$0xff]
        %v611 = vld [vmem:[%s321 + $0x680] sm:$0xff]
        %v612 = vld [vmem:[%s321 + $0x688] sm:$0xff]
        %v613 = vld [vmem:[%s321 + $0x690] sm:$0xff]
        %v614 = vld [vmem:[%s321 + $0x698] sm:$0xff]
        %v615 = vld [vmem:[%s321 + $0x6a0] sm:$0xff]
        %v616 = vld [vmem:[%s321 + $0x6a8] sm:$0xff]
        %v617 = vld [vmem:[%s321 + $0x6b0] sm:$0xff]
        %v618 = vld [vmem:[%s321 + $0x6b8] sm:$0xff]
        %v619 = vld [vmem:[%s321 + $0x6c0] sm:$0xff]
        %v620 = vld [vmem:[%s321 + $0x6c8] sm:$0xff]
        %v621 = vld [vmem:[%s321 + $0x6d0] sm:$0xff]
        %v622 = vld [vmem:[%s321 + $0x6d8] sm:$0xff]
        %v623 = vld [vmem:[%s321 + $0x6e0] sm:$0xff]
        %v624 = vld [vmem:[%s321 + $0x6e8] sm:$0xff]
        %v625 = vld [vmem:[%s321 + $0x6f0] sm:$0xff]
        %v626 = vld [vmem:[%s321 + $0x6f8] sm:$0xff]
        %v627 = vld [vmem:[%s321 + $0x700] sm:$0xff]
        %v628 = vld [vmem:[%s321 + $0x708] sm:$0xff]
        %v629 = vld [vmem:[%s321 + $0x710] sm:$0xff]
        %v630 = vld [vmem:[%s321 + $0x718] sm:$0xff]
        %v631 = vld [vmem:[%s321 + $0x720] sm:$0xff]
        %v632 = vld [vmem:[%s321 + $0x728] sm:$0xff]
        %v633 = vld [vmem:[%s321 + $0x730] sm:$0xff]
        %v634 = vld [vmem:[%s321 + $0x738] sm:$0xff]
        %v635 = vld [vmem:[%s321 + $0x740] sm:$0xff]
        %v636 = vld [vmem:[%s321 + $0x748] sm:$0xff]
        %v637 = vld [vmem:[%s321 + $0x750] sm:$0xff]
        %v638 = vld [vmem:[%s321 + $0x758] sm:$0xff]
        %v639 = vld [vmem:[%s321 + $0x760] sm:$0xff]
        %v640 = vld [vmem:[%s321 + $0x768] sm:$0xff]
        %v641 = vld [vmem:[%s321 + $0x770] sm:$0xff]
        %v642 = vld [vmem:[%s321 + $0x778] sm:$0xff]
        %v643 = vld [vmem:[%s321 + $0x780] sm:$0xff]
        %v644 = vld [vmem:[%s321 + $0x788] sm:$0xff]
        %v645 = vld [vmem:[%s321 + $0x790] sm:$0xff]
        %v646 = vld [vmem:[%s321 + $0x798] sm:$0xff]
        %v647 = vld [vmem:[%s321 + $0x7a0] sm:$0xff]
        %v648 = vld [vmem:[%s321 + $0x7a8] sm:$0xff]
        %v649 = vld [vmem:[%s321 + $0x7b0] sm:$0xff]
        %v650 = vld [vmem:[%s321 + $0x7b8] sm:$0xff]
        %v651 = vld [vmem:[%s321 + $0x7c0] sm:$0xff]
        %v652 = vld [vmem:[%s321 + $0x7c8] sm:$0xff]
        %v653 = vld [vmem:[%s321 + $0x7d0] sm:$0xff]
        %v654 = vld [vmem:[%s321 + $0x7d8] sm:$0xff]
        %v655 = vld [vmem:[%s321 + $0x7e0] sm:$0xff]
        %v656 = vld [vmem:[%s321 + $0x7e8] sm:$0xff]
        %v657 = vld [vmem:[%s321 + $0x7f0] sm:$0xff]
        %v658 = vld [vmem:[%s321 + $0x7f8] sm:$0xff]
        %v659 = vld [vmem:[%s321 + $0x800] sm:$0xff]
        %v660 = vld [vmem:[%s321 + $0x808] sm:$0xff]
        %v661 = vld [vmem:[%s321 + $0x810] sm:$0xff]
        %v662 = vld [vmem:[%s321 + $0x818] sm:$0xff]
        %v663 = vld [vmem:[%s321 + $0x820] sm:$0xff]
        %v664 = vld [vmem:[%s321 + $0x828] sm:$0xff]
        %v665 = vld [vmem:[%s321 + $0x830] sm:$0xff]
        %v666 = vld [vmem:[%s321 + $0x838] sm:$0xff]
        %v667 = vld [vmem:[%s321 + $0x840] sm:$0xff]
        %v668 = vld [vmem:[%s321 + $0x848] sm:$0xff]
        %v669 = vld [vmem:[%s321 + $0x850] sm:$0xff]
        %v670 = vld [vmem:[%s321 + $0x858] sm:$0xff]
        %v671 = vld [vmem:[%s321 + $0x860] sm:$0xff]
        %v672 = vld [vmem:[%s321 + $0x868] sm:$0xff]
        %v673 = vld [vmem:[%s321 + $0x870] sm:$0xff]
        %v674 = vld [vmem:[%s321 + $0x878] sm:$0xff]
        %v675 = vld [vmem:[%s321 + $0x880] sm:$0xff]
        %v676 = vld [vmem:[%s321 + $0x888] sm:$0xff]
        %v677 = vld [vmem:[%s321 + $0x890] sm:$0xff]
        %v678 = vld [vmem:[%s321 + $0x898] sm:$0xff]
        %v679 = vld [vmem:[%s321 + $0x8a0] sm:$0xff]
        %v680 = vld [vmem:[%s321 + $0x8a8] sm:$0xff]
        %v681 = vld [vmem:[%s321 + $0x8b0] sm:$0xff]
        %v682 = vld [vmem:[%s321 + $0x8b8] sm:$0xff]
        %v683 = vld [vmem:[%s321 + $0x8c0] sm:$0xff]
        %v684 = vld [vmem:[%s321 + $0x8c8] sm:$0xff]
        %v685 = vld [vmem:[%s321 + $0x8d0] sm:$0xff]
        %v686 = vld [vmem:[%s321 + $0x8d8] sm:$0xff]
        %v687 = vld [vmem:[%s321 + $0x8e0] sm:$0xff]
        %v688 = vld [vmem:[%s321 + $0x8e8] sm:$0xff]
        %v689 = vld [vmem:[%s321 + $0x8f0] sm:$0xff]
        %v690 = vld [vmem:[%s321 + $0x8f8] sm:$0xff]
        %v691 = vld [vmem:[%s321 + $0x900] sm:$0xff]
        %v692 = vld [vmem:[%s321 + $0x908] sm:$0xff]
        %v693 = vld [vmem:[%s321 + $0x910] sm:$0xff]
        %v694 = vld [vmem:[%s321 + $0x918] sm:$0xff]
        %v695 = vld [vmem:[%s321 + $0x920] sm:$0xff]
        %v696 = vld [vmem:[%s321 + $0x928] sm:$0xff]
        %v697 = vld [vmem:[%s321 + $0x930] sm:$0xff]
        %v698 = vld [vmem:[%s321 + $0x938] sm:$0xff]
        %v699 = vld [vmem:[%s321 + $0x940] sm:$0xff]
        %v700 = vld [vmem:[%s321 + $0x948] sm:$0xff]
        %v701 = vld [vmem:[%s321 + $0x950] sm:$0xff]
        %v702 = vld [vmem:[%s321 + $0x958] sm:$0xff]
        %v703 = vld [vmem:[%s321 + $0x960] sm:$0xff]
        %v704 = vld [vmem:[%s321 + $0x968] sm:$0xff]
        %v705 = vld [vmem:[%s321 + $0x970] sm:$0xff]
        %v706 = vld [vmem:[%s321 + $0x978] sm:$0xff]
        %v707 = vld [vmem:[%s321 + $0x980] sm:$0xff]
        %v708 = vld [vmem:[%s321 + $0x988] sm:$0xff]
        %v709 = vld [vmem:[%s321 + $0x990] sm:$0xff]
        %v710 = vld [vmem:[%s321 + $0x998] sm:$0xff]
        %v711 = vld [vmem:[%s321 + $0x9a0] sm:$0xff]
        %v712 = vld [vmem:[%s321 + $0x9a8] sm:$0xff]
        %v713 = vld [vmem:[%s321 + $0x9b0] sm:$0xff]
        %v714 = vld [vmem:[%s321 + $0x9b8] sm:$0xff]
        %v715 = vld [vmem:[%s321 + $0x9c0] sm:$0xff]
        %v716 = vld [vmem:[%s321 + $0x9c8] sm:$0xff]
        %v717 = vld [vmem:[%s321 + $0x9d0] sm:$0xff]
        %v718 = vld [vmem:[%s321 + $0x9d8] sm:$0xff]
        %v719 = vld [vmem:[%s321 + $0x9e0] sm:$0xff]
        %v720 = vld [vmem:[%s321 + $0x9e8] sm:$0xff]
        %v721 = vld [vmem:[%s321 + $0x9f0] sm:$0xff]
        %v722 = vld [vmem:[%s321 + $0x9f8] sm:$0xff]
        %v723 = vld [vmem:[%s321 + $0xa00] sm:$0xff]
        %v724 = vld [vmem:[%s321 + $0xa08] sm:$0xff]
        %v725 = vld [vmem:[%s321 + $0xa10] sm:$0xff]
        %v726 = vld [vmem:[%s321 + $0xa18] sm:$0xff]
        %v727 = vld [vmem:[%s321 + $0xa20] sm:$0xff]
        %v728 = vld [vmem:[%s321 + $0xa28] sm:$0xff]
        %v729 = vld [vmem:[%s321 + $0xa30] sm:$0xff]
        %v730 = vld [vmem:[%s321 + $0xa38] sm:$0xff]
        %v731 = vld [vmem:[%s321 + $0xa40] sm:$0xff]
        %v732 = vld [vmem:[%s321 + $0xa48] sm:$0xff]
        %v733 = vld [vmem:[%s321 + $0xa50] sm:$0xff]
        %v734 = vld [vmem:[%s321 + $0xa58] sm:$0xff]
        %v735 = vld [vmem:[%s321 + $0xa60] sm:$0xff]
        %v736 = vld [vmem:[%s321 + $0xa68] sm:$0xff]
        %v737 = vld [vmem:[%s321 + $0xa70] sm:$0xff]
        %v738 = vld [vmem:[%s321 + $0xa78] sm:$0xff]
        %v739 = vld [vmem:[%s321 + $0xa80] sm:$0xff]
        %v740 = vld [vmem:[%s321 + $0xa88] sm:$0xff]
        %v741 = vld [vmem:[%s321 + $0xa90] sm:$0xff]
        %v742 = vld [vmem:[%s321 + $0xa98] sm:$0xff]
        %v743 = vld [vmem:[%s321 + $0xaa0] sm:$0xff]
        %v744 = vld [vmem:[%s321 + $0xaa8] sm:$0xff]
        %v745 = vld [vmem:[%s321 + $0xab0] sm:$0xff]
        %v746 = vld [vmem:[%s321 + $0xab8] sm:$0xff]
        %v747 = vld [vmem:[%s321 + $0xac0] sm:$0xff]
        %v748 = vld [vmem:[%s321 + $0xac8] sm:$0xff]
        %v749 = vld [vmem:[%s321 + $0xad0] sm:$0xff]
        %v750 = vld [vmem:[%s321 + $0xad8] sm:$0xff]
        %v751 = vld [vmem:[%s321 + $0xae0] sm:$0xff]
        %v752 = vld [vmem:[%s321 + $0xae8] sm:$0xff]
        %v753 = vld [vmem:[%s321 + $0xaf0] sm:$0xff]
        %v754 = vld [vmem:[%s321 + $0xaf8] sm:$0xff]
        %v755 = vld [vmem:[%s321 + $0xb00] sm:$0xff]
        %v756 = vld [vmem:[%s321 + $0xb08] sm:$0xff]
        %v757 = vld [vmem:[%s321 + $0xb10] sm:$0xff]
        %v758 = vld [vmem:[%s321 + $0xb18] sm:$0xff]
        %v759 = vld [vmem:[%s321 + $0xb20] sm:$0xff]
        %v760 = vld [vmem:[%s321 + $0xb28] sm:$0xff]
        %v761 = vld [vmem:[%s321 + $0xb30] sm:$0xff]
        %v762 = vld [vmem:[%s321 + $0xb38] sm:$0xff]
        %v763 = vld [vmem:[%s321 + $0xb40] sm:$0xff]
        %v764 = vld [vmem:[%s321 + $0xb48] sm:$0xff]
        %v765 = vld [vmem:[%s321 + $0xb50] sm:$0xff]
        %v766 = vld [vmem:[%s321 + $0xb58] sm:$0xff]
        %v767 = vld [vmem:[%s321 + $0xb60] sm:$0xff]
        %v768 = vld [vmem:[%s321 + $0xb68] sm:$0xff]
        %v769 = vld [vmem:[%s321 + $0xb70] sm:$0xff]
        %v770 = vld [vmem:[%s321 + $0xb78] sm:$0xff]
        %v771 = vld [vmem:[%s321 + $0xb80] sm:$0xff]
        %v772 = vld [vmem:[%s321 + $0xb88] sm:$0xff]
        %v773 = vld [vmem:[%s321 + $0xb90] sm:$0xff]
        %v774 = vld [vmem:[%s321 + $0xb98] sm:$0xff]
        %v775 = vld [vmem:[%s321 + $0xba0] sm:$0xff]
        %v776 = vld [vmem:[%s321 + $0xba8] sm:$0xff]
        %v777 = vld [vmem:[%s321 + $0xbb0] sm:$0xff]
        %v778 = vld [vmem:[%s321 + $0xbb8] sm:$0xff]
        %v779 = vld [vmem:[%s321 + $0xbc0] sm:$0xff]
        %v780 = vld [vmem:[%s321 + $0xbc8] sm:$0xff]
        %v781 = vld [vmem:[%s321 + $0xbd0] sm:$0xff]
        %v782 = vld [vmem:[%s321 + $0xbd8] sm:$0xff]
        %v783 = vld [vmem:[%s321 + $0xbe0] sm:$0xff]
        %v784 = vld [vmem:[%s321 + $0xbe8] sm:$0xff]
        %v785 = vld [vmem:[%s321 + $0xbf0] sm:$0xff]
        %v786 = vld [vmem:[%s321 + $0xbf8] sm:$0xff]
        %v787 = vld [vmem:[%s321 + $0xc00] sm:$0xff]
        %v788 = vld [vmem:[%s321 + $0xc08] sm:$0xff]
        %v789 = vld [vmem:[%s321 + $0xc10] sm:$0xff]
        %v790 = vld [vmem:[%s321 + $0xc18] sm:$0xff]
        %v791 = vld [vmem:[%s321 + $0xc20] sm:$0xff]
        %v792 = vld [vmem:[%s321 + $0xc28] sm:$0xff]
        %v793 = vld [vmem:[%s321 + $0xc30] sm:$0xff]
        %v794 = vld [vmem:[%s321 + $0xc38] sm:$0xff]
        %v795 = vld [vmem:[%s321 + $0xc40] sm:$0xff]
        %v796 = vld [vmem:[%s321 + $0xc48] sm:$0xff]
        %v797 = vld [vmem:[%s321 + $0xc50] sm:$0xff]
        %v798 = vld [vmem:[%s321 + $0xc58] sm:$0xff]
        %v799 = vld [vmem:[%s321 + $0xc60] sm:$0xff]
        %v800 = vld [vmem:[%s321 + $0xc68] sm:$0xff]
        %v801 = vld [vmem:[%s321 + $0xc70] sm:$0xff]
        %v802 = vld [vmem:[%s321 + $0xc78] sm:$0xff]
        %v803 = vld [vmem:[%s321 + $0xc80] sm:$0xff]
        %v804 = vld [vmem:[%s321 + $0xc88] sm:$0xff]
        %v805 = vld [vmem:[%s321 + $0xc90] sm:$0xff]
        %v806 = vld [vmem:[%s321 + $0xc98] sm:$0xff]
        %v807 = vld [vmem:[%s321 + $0xca0] sm:$0xff]
        %v808 = vld [vmem:[%s321 + $0xca8] sm:$0xff]
        %v809 = vld [vmem:[%s321 + $0xcb0] sm:$0xff]
        %v810 = vld [vmem:[%s321 + $0xcb8] sm:$0xff]
        %v811 = vld [vmem:[%s321 + $0xcc0] sm:$0xff]
        %v812 = vld [vmem:[%s321 + $0xcc8] sm:$0xff]
        %v813 = vld [vmem:[%s321 + $0xcd0] sm:$0xff]
        %v814 = vld [vmem:[%s321 + $0xcd8] sm:$0xff]
        %v815 = vld [vmem:[%s321 + $0xce0] sm:$0xff]
        %v816 = vld [vmem:[%s321 + $0xce8] sm:$0xff]
        %v817 = vld [vmem:[%s321 + $0xcf0] sm:$0xff]
        %v818 = vld [vmem:[%s321 + $0xcf8] sm:$0xff]
        %v819 = vld [vmem:[%s321 + $0xd00] sm:$0xff]
        %v820 = vld [vmem:[%s321 + $0xd08] sm:$0xff]
        %v821 = vld [vmem:[%s321 + $0xd10] sm:$0xff]
        %v822 = vld [vmem:[%s321 + $0xd18] sm:$0xff]
        %v823 = vld [vmem:[%s321 + $0xd20] sm:$0xff]
        %v824 = vld [vmem:[%s321 + $0xd28] sm:$0xff]
        %v825 = vld [vmem:[%s321 + $0xd30] sm:$0xff]
        %v826 = vld [vmem:[%s321 + $0xd38] sm:$0xff]
        %v827 = vld [vmem:[%s321 + $0xd40] sm:$0xff]
        %v828 = vld [vmem:[%s321 + $0xd48] sm:$0xff]
        %v829 = vld [vmem:[%s321 + $0xd50] sm:$0xff]
        %v830 = vld [vmem:[%s321 + $0xd58] sm:$0xff]
        %v831 = vld [vmem:[%s321 + $0xd60] sm:$0xff]
        %v832 = vld [vmem:[%s321 + $0xd68] sm:$0xff]
        %v833 = vld [vmem:[%s321 + $0xd70] sm:$0xff]
        %v834 = vld [vmem:[%s321 + $0xd78] sm:$0xff]
        %v835 = vld [vmem:[%s321 + $0xd80] sm:$0xff]
        %v836 = vld [vmem:[%s321 + $0xd88] sm:$0xff]
        %v837 = vld [vmem:[%s321 + $0xd90] sm:$0xff]
        %v838 = vld [vmem:[%s321 + $0xd98] sm:$0xff]
        %v839 = vld [vmem:[%s321 + $0xda0] sm:$0xff]
        %v840 = vld [vmem:[%s321 + $0xda8] sm:$0xff]
        %v841 = vld [vmem:[%s321 + $0xdb0] sm:$0xff]
        %v842 = vld [vmem:[%s321 + $0xdb8] sm:$0xff]
        %v843 = vld [vmem:[%s321 + $0xdc0] sm:$0xff]
        %v844 = vld [vmem:[%s321 + $0xdc8] sm:$0xff]
        %v845 = vld [vmem:[%s321 + $0xdd0] sm:$0xff]
        %v846 = vld [vmem:[%s321 + $0xdd8] sm:$0xff]
        %v847 = vld [vmem:[%s321 + $0xde0] sm:$0xff]
        %v848 = vld [vmem:[%s321 + $0xde8] sm:$0xff]
        %v849 = vld [vmem:[%s321 + $0xdf0] sm:$0xff]
        %v850 = vld [vmem:[%s321 + $0xdf8] sm:$0xff]
        %v851 = vld [vmem:[%s321 + $0xe00] sm:$0xff]
        %v852 = vld [vmem:[%s321 + $0xe08] sm:$0xff]
        %v853 = vld [vmem:[%s321 + $0xe10] sm:$0xff]
        %v854 = vld [vmem:[%s321 + $0xe18] sm:$0xff]
        %v855 = vld [vmem:[%s321 + $0xe20] sm:$0xff]
        %v856 = vld [vmem:[%s321 + $0xe28] sm:$0xff]
        %v857 = vld [vmem:[%s321 + $0xe30] sm:$0xff]
        %v858 = vld [vmem:[%s321 + $0xe38] sm:$0xff]
        %v859 = vld [vmem:[%s321 + $0xe40] sm:$0xff]
        %v860 = vld [vmem:[%s321 + $0xe48] sm:$0xff]
        %v861 = vld [vmem:[%s321 + $0xe50] sm:$0xff]
        %v862 = vld [vmem:[%s321 + $0xe58] sm:$0xff]
        %v863 = vld [vmem:[%s321 + $0xe60] sm:$0xff]
        %v864 = vld [vmem:[%s321 + $0xe68] sm:$0xff]
        %v865 = vld [vmem:[%s321 + $0xe70] sm:$0xff]
        %v866 = vld [vmem:[%s321 + $0xe78] sm:$0xff]
        %v867 = vld [vmem:[%s321 + $0xe80] sm:$0xff]
        %v868 = vld [vmem:[%s321 + $0xe88] sm:$0xff]
        %v869 = vld [vmem:[%s321 + $0xe90] sm:$0xff]
        %v870 = vld [vmem:[%s321 + $0xe98] sm:$0xff]
        %v871 = vld [vmem:[%s321 + $0xea0] sm:$0xff]
        %v872 = vld [vmem:[%s321 + $0xea8] sm:$0xff]
        %v873 = vld [vmem:[%s321 + $0xeb0] sm:$0xff]
        %v874 = vld [vmem:[%s321 + $0xeb8] sm:$0xff]
        %v875 = vld [vmem:[%s321 + $0xec0] sm:$0xff]
        %v876 = vld [vmem:[%s321 + $0xec8] sm:$0xff]
        %v877 = vld [vmem:[%s321 + $0xed0] sm:$0xff]
        %v878 = vld [vmem:[%s321 + $0xed8] sm:$0xff]
        %v879 = vld [vmem:[%s321 + $0xee0] sm:$0xff]
        %v880 = vld [vmem:[%s321 + $0xee8] sm:$0xff]
        %v881 = vld [vmem:[%s321 + $0xef0] sm:$0xff]
        %v882 = vld [vmem:[%s321 + $0xef8] sm:$0xff]
        %v883 = vld [vmem:[%s321 + $0xf00] sm:$0xff]
        %v884 = vld [vmem:[%s321 + $0xf08] sm:$0xff]
        %v885 = vld [vmem:[%s321 + $0xf10] sm:$0xff]
        %v886 = vld [vmem:[%s321 + $0xf18] sm:$0xff]
        %v887 = vld [vmem:[%s321 + $0xf20] sm:$0xff]
        %v888 = vld [vmem:[%s321 + $0xf28] sm:$0xff]
        %v889 = vld [vmem:[%s321 + $0xf30] sm:$0xff]
        %v890 = vld [vmem:[%s321 + $0xf38] sm:$0xff]
        %v891 = vld [vmem:[%s321 + $0xf40] sm:$0xff]
        %v892 = vld [vmem:[%s321 + $0xf48] sm:$0xff]
        %v893 = vld [vmem:[%s321 + $0xf50] sm:$0xff]
        %v894 = vld [vmem:[%s321 + $0xf58] sm:$0xff]
        %v895 = vld [vmem:[%s321 + $0xf60] sm:$0xff]
        %v896 = vld [vmem:[%s321 + $0xf68] sm:$0xff]
        %v897 = vld [vmem:[%s321 + $0xf70] sm:$0xff]
        %v898 = vld [vmem:[%s321 + $0xf78] sm:$0xff]
        %v899 = vld [vmem:[%s321 + $0xf80] sm:$0xff]
        %v900 = vld [vmem:[%s321 + $0xf88] sm:$0xff]
        %v901 = vld [vmem:[%s321 + $0xf90] sm:$0xff]
        %v902 = vld [vmem:[%s321 + $0xf98] sm:$0xff]
        %v903 = vld [vmem:[%s321 + $0xfa0] sm:$0xff]
        %v904 = vld [vmem:[%s321 + $0xfa8] sm:$0xff]
        %v905 = vld [vmem:[%s321 + $0xfb0] sm:$0xff]
        %v906 = vld [vmem:[%s321 + $0xfb8] sm:$0xff]
        %v907 = vld [vmem:[%s321 + $0xfc0] sm:$0xff]
        %v908 = vld [vmem:[%s321 + $0xfc8] sm:$0xff]
        %v909 = vld [vmem:[%s321 + $0xfd0] sm:$0xff]
        %v910 = vld [vmem:[%s321 + $0xfd8] sm:$0xff]
        %v911 = vld [vmem:[%s321 + $0xfe0] sm:$0xff]
        %v912 = vld [vmem:[%s321 + $0xfe8] sm:$0xff]
        %v913 = vld [vmem:[%s321 + $0xff0] sm:$0xff]
        %v914 = vld [vmem:[%s321 + $0xff8] sm:$0xff]
        %v915 = vld [vmem:[%s330] sm:$0xf]
        %v917 = vlaneseq
        %v918 = vshrl.u32 %v917, 7
        %v919 = vsub.s32 0, %v918
        %v920 = vrot.slane %v915, %v919
        %v921 = vlaneseq
        %v922 = vshrl.u32 %v921, 7
        %v923 = vsub.s32 1, %v922
        %v924 = vrot.slane %v915, %v923
        %v925 = vlaneseq
        %v926 = vshrl.u32 %v925, 7
        %v927 = vsub.s32 2, %v926
        %v928 = vrot.slane %v915, %v927
        %v929 = vlaneseq
        %v930 = vshrl.u32 %v929, 7
        %v931 = vsub.s32 3, %v930
        %v932 = vrot.slane %v915, %v931
        %937 = vmatprep.subr.mxu0 %v464
        %938 = vmatpush1.msra.mxu0 %v463
        %939 = vmatprep.subr.mxu0 %v460
        %940 = vmatpush1.msra.mxu0 %v459
        %941 = vmatprep.subr.mxu0 %v456
        %942 = vmatpush1.msra.mxu0 %v455
        %943 = vmatprep.subr.mxu0 %v452
        %944 = vmatpush1.msra.mxu0 %v451
        %945 = vmatprep.subr.mxu0 %v448
        %946 = vmatpush1.msra.mxu0 %v447
        %947 = vmatprep.subr.mxu0 %v444
        %948 = vmatpush1.msra.mxu0 %v443
        %949 = vmatprep.subr.mxu0 %v440
        %950 = vmatpush1.msra.mxu0 %v439
        %951 = vmatprep.subr.mxu0 %v436
        %952 = vmatpush1.msra.mxu0 %v435
        %953 = vmatprep.subr.mxu0 %v432
        %954 = vmatpush1.msra.mxu0 %v431
        %955 = vmatprep.subr.mxu0 %v428
        %956 = vmatpush1.msra.mxu0 %v427
        %957 = vmatprep.subr.mxu0 %v424
        %958 = vmatpush1.msra.mxu0 %v423
        %959 = vmatprep.subr.mxu0 %v420
        %960 = vmatpush1.msra.mxu0 %v419
        %961 = vmatprep.subr.mxu0 %v416
        %962 = vmatpush1.msra.mxu0 %v415
        %963 = vmatprep.subr.mxu0 %v412
        %964 = vmatpush1.msra.mxu0 %v411
        %965 = vmatprep.subr.mxu0 %v408
        %966 = vmatpush1.msra.mxu0 %v407
        %967 = vmatprep.subr.mxu0 %v404
        %968 = vmatpush1.msra.mxu0 %v403
        %969 = vmatprep.subr.mxu0 %v528
        %970 = vmatpush2.msra.mxu0 %v527
        %971 = vmatprep.subr.mxu0 %v524
        %972 = vmatpush2.msra.mxu0 %v523
        %973 = vmatprep.subr.mxu0 %v520
        %974 = vmatpush2.msra.mxu0 %v519
        %975 = vmatprep.subr.mxu0 %v516
        %976 = vmatpush2.msra.mxu0 %v515
        %977 = vmatprep.subr.mxu0 %v512
        %978 = vmatpush2.msra.mxu0 %v511
        %979 = vmatprep.subr.mxu0 %v508
        %980 = vmatpush2.msra.mxu0 %v507
        %981 = vmatprep.subr.mxu0 %v504
        %982 = vmatpush2.msra.mxu0 %v503
        %983 = vmatprep.subr.mxu0 %v500
        %984 = vmatpush2.msra.mxu0 %v499
        %985 = vmatprep.subr.mxu0 %v496
        %986 = vmatpush2.msra.mxu0 %v495
        %987 = vmatprep.subr.mxu0 %v492
        %988 = vmatpush2.msra.mxu0 %v491
        %989 = vmatprep.subr.mxu0 %v488
        %990 = vmatpush2.msra.mxu0 %v487
        %991 = vmatprep.subr.mxu0 %v484
        %992 = vmatpush2.msra.mxu0 %v483
        %993 = vmatprep.subr.mxu0 %v480
        %994 = vmatpush2.msra.mxu0 %v479
        %995 = vmatprep.subr.mxu0 %v476
        %996 = vmatpush2.msra.mxu0 %v475
        %997 = vmatprep.subr.mxu0 %v472
        %998 = vmatpush2.msra.mxu0 %v471
        %999 = vmatprep.subr.mxu0 %v468
        %1000 = vmatpush2.msra.mxu0 %v467
        %1001 = vmatprep.mubr.f32.mxu0 %v396
        %1002 = vmatmul.mubr.f32.gmra.mxu0 %v395
        %v1003 = vpop.f32.mrf.mxu0
        %v1004 = vadd.f32 %v920, %v1003
        %v1005 = vpop.f32.mrf.mxu0
        %v1006 = vadd.f32 %v924, %v1005
        %1007 = vdwg.mxu0
        %1008 = vmatprep.subr.mxu0 %v592
        %1009 = vmatpush1.msra.mxu0 %v591
        %1010 = vmatprep.subr.mxu0 %v588
        %1011 = vmatpush1.msra.mxu0 %v587
        %1012 = vmatprep.subr.mxu0 %v584
        %1013 = vmatpush1.msra.mxu0 %v583
        %1014 = vmatprep.subr.mxu0 %v580
        %1015 = vmatpush1.msra.mxu0 %v579
        %1016 = vmatprep.subr.mxu0 %v576
        %1017 = vmatpush1.msra.mxu0 %v575
        %1018 = vmatprep.subr.mxu0 %v572
        %1019 = vmatpush1.msra.mxu0 %v571
        %1020 = vmatprep.subr.mxu0 %v568
        %1021 = vmatpush1.msra.mxu0 %v567
        %1022 = vmatprep.subr.mxu0 %v564
        %1023 = vmatpush1.msra.mxu0 %v563
        %1024 = vmatprep.subr.mxu0 %v560
        %1025 = vmatpush1.msra.mxu0 %v559
        %1026 = vmatprep.subr.mxu0 %v556
        %1027 = vmatpush1.msra.mxu0 %v555
        %1028 = vmatprep.subr.mxu0 %v552
        %1029 = vmatpush1.msra.mxu0 %v551
        %1030 = vmatprep.subr.mxu0 %v548
        %1031 = vmatpush1.msra.mxu0 %v547
        %1032 = vmatprep.subr.mxu0 %v544
        %1033 = vmatpush1.msra.mxu0 %v543
        %1034 = vmatprep.subr.mxu0 %v540
        %1035 = vmatpush1.msra.mxu0 %v539
        %1036 = vmatprep.subr.mxu0 %v536
        %1037 = vmatpush1.msra.mxu0 %v535
        %1038 = vmatprep.subr.mxu0 %v532
        %1039 = vmatpush1.msra.mxu0 %v531
        %1040 = vmatprep.subr.mxu0 %v656
        %1041 = vmatpush2.msra.mxu0 %v655
        %1042 = vmatprep.subr.mxu0 %v652
        %1043 = vmatpush2.msra.mxu0 %v651
        %1044 = vmatprep.subr.mxu0 %v648
        %1045 = vmatpush2.msra.mxu0 %v647
        %1046 = vmatprep.subr.mxu0 %v644
        %1047 = vmatpush2.msra.mxu0 %v643
        %1048 = vmatprep.subr.mxu0 %v640
        %1049 = vmatpush2.msra.mxu0 %v639
        %1050 = vmatprep.subr.mxu0 %v636
        %1051 = vmatpush2.msra.mxu0 %v635
        %1052 = vmatprep.subr.mxu0 %v632
        %1053 = vmatpush2.msra.mxu0 %v631
        %1054 = vmatprep.subr.mxu0 %v628
        %1055 = vmatpush2.msra.mxu0 %v627
        %1056 = vmatprep.subr.mxu0 %v624
        %1057 = vmatpush2.msra.mxu0 %v623
        %1058 = vmatprep.subr.mxu0 %v620
        %1059 = vmatpush2.msra.mxu0 %v619
        %1060 = vmatprep.subr.mxu0 %v616
        %1061 = vmatpush2.msra.mxu0 %v615
        %1062 = vmatprep.subr.mxu0 %v612
        %1063 = vmatpush2.msra.mxu0 %v611
        %1064 = vmatprep.subr.mxu0 %v608
        %1065 = vmatpush2.msra.mxu0 %v607
        %1066 = vmatprep.subr.mxu0 %v604
        %1067 = vmatpush2.msra.mxu0 %v603
        %1068 = vmatprep.subr.mxu0 %v600
        %1069 = vmatpush2.msra.mxu0 %v599
        %1070 = vmatprep.subr.mxu0 %v596
        %1071 = vmatpush2.msra.mxu0 %v595
        %1072 = vmatprep.mubr.f32.mxu0 %v398
        %1073 = vmatmul.mubr.f32.gmra.mxu0 %v397
        %v1074 = vpop.f32.mrf.mxu0
        %v1075 = vadd.f32 %v1004, %v1074
        %v1076 = vpop.f32.mrf.mxu0
        %v1077 = vadd.f32 %v1006, %v1076
        %1078 = vdwg.mxu0
        %1079 = vmatprep.subr.mxu0 %v720
        %1080 = vmatpush1.msra.mxu0 %v719
        %1081 = vmatprep.subr.mxu0 %v716
        %1082 = vmatpush1.msra.mxu0 %v715
        %1083 = vmatprep.subr.mxu0 %v712
        %1084 = vmatpush1.msra.mxu0 %v711
        %1085 = vmatprep.subr.mxu0 %v708
        %1086 = vmatpush1.msra.mxu0 %v707
        %1087 = vmatprep.subr.mxu0 %v704
        %1088 = vmatpush1.msra.mxu0 %v703
        %1089 = vmatprep.subr.mxu0 %v700
        %1090 = vmatpush1.msra.mxu0 %v699
        %1091 = vmatprep.subr.mxu0 %v696
        %1092 = vmatpush1.msra.mxu0 %v695
        %1093 = vmatprep.subr.mxu0 %v692
        %1094 = vmatpush1.msra.mxu0 %v691
        %1095 = vmatprep.subr.mxu0 %v688
        %1096 = vmatpush1.msra.mxu0 %v687
        %1097 = vmatprep.subr.mxu0 %v684
        %1098 = vmatpush1.msra.mxu0 %v683
        %1099 = vmatprep.subr.mxu0 %v680
        %1100 = vmatpush1.msra.mxu0 %v679
        %1101 = vmatprep.subr.mxu0 %v676
        %1102 = vmatpush1.msra.mxu0 %v675
        %1103 = vmatprep.subr.mxu0 %v672
        %1104 = vmatpush1.msra.mxu0 %v671
        %1105 = vmatprep.subr.mxu0 %v668
        %1106 = vmatpush1.msra.mxu0 %v667
        %1107 = vmatprep.subr.mxu0 %v664
        %1108 = vmatpush1.msra.mxu0 %v663
        %1109 = vmatprep.subr.mxu0 %v660
        %1110 = vmatpush1.msra.mxu0 %v659
        %1111 = vmatprep.subr.mxu0 %v784
        %1112 = vmatpush2.msra.mxu0 %v783
        %1113 = vmatprep.subr.mxu0 %v780
        %1114 = vmatpush2.msra.mxu0 %v779
        %1115 = vmatprep.subr.mxu0 %v776
        %1116 = vmatpush2.msra.mxu0 %v775
        %1117 = vmatprep.subr.mxu0 %v772
        %1118 = vmatpush2.msra.mxu0 %v771
        %1119 = vmatprep.subr.mxu0 %v768
        %1120 = vmatpush2.msra.mxu0 %v767
        %1121 = vmatprep.subr.mxu0 %v764
        %1122 = vmatpush2.msra.mxu0 %v763
        %1123 = vmatprep.subr.mxu0 %v760
        %1124 = vmatpush2.msra.mxu0 %v759
        %1125 = vmatprep.subr.mxu0 %v756
        %1126 = vmatpush2.msra.mxu0 %v755
        %1127 = vmatprep.subr.mxu0 %v752
        %1128 = vmatpush2.msra.mxu0 %v751
        %1129 = vmatprep.subr.mxu0 %v748
        %1130 = vmatpush2.msra.mxu0 %v747
        %1131 = vmatprep.subr.mxu0 %v744
        %1132 = vmatpush2.msra.mxu0 %v743
        %1133 = vmatprep.subr.mxu0 %v740
        %1134 = vmatpush2.msra.mxu0 %v739
        %1135 = vmatprep.subr.mxu0 %v736
        %1136 = vmatpush2.msra.mxu0 %v735
        %1137 = vmatprep.subr.mxu0 %v732
        %1138 = vmatpush2.msra.mxu0 %v731
        %1139 = vmatprep.subr.mxu0 %v728
        %1140 = vmatpush2.msra.mxu0 %v727
        %1141 = vmatprep.subr.mxu0 %v724
        %1142 = vmatpush2.msra.mxu0 %v723
        %1143 = vmatprep.mubr.f32.mxu0 %v400
        %1144 = vmatmul.mubr.f32.gmra.mxu0 %v399
        %v1145 = vpop.f32.mrf.mxu0
        %v1146 = vadd.f32 %v1075, %v1145
        %v1147 = vpop.f32.mrf.mxu0
        %v1148 = vadd.f32 %v1077, %v1147
        %1149 = vdwg.mxu0
        %1150 = vmatprep.subr.mxu0 %v848
        %1151 = vmatpush1.msra.mxu0 %v847
        %1152 = vmatprep.subr.mxu0 %v844
        %1153 = vmatpush1.msra.mxu0 %v843
        %1154 = vmatprep.subr.mxu0 %v840
        %1155 = vmatpush1.msra.mxu0 %v839
        %1156 = vmatprep.subr.mxu0 %v836
        %1157 = vmatpush1.msra.mxu0 %v835
        %1158 = vmatprep.subr.mxu0 %v832
        %1159 = vmatpush1.msra.mxu0 %v831
        %1160 = vmatprep.subr.mxu0 %v828
        %1161 = vmatpush1.msra.mxu0 %v827
        %1162 = vmatprep.subr.mxu0 %v824
        %1163 = vmatpush1.msra.mxu0 %v823
        %1164 = vmatprep.subr.mxu0 %v820
        %1165 = vmatpush1.msra.mxu0 %v819
        %1166 = vmatprep.subr.mxu0 %v816
        %1167 = vmatpush1.msra.mxu0 %v815
        %1168 = vmatprep.subr.mxu0 %v812
        %1169 = vmatpush1.msra.mxu0 %v811
        %1170 = vmatprep.subr.mxu0 %v808
        %1171 = vmatpush1.msra.mxu0 %v807
        %1172 = vmatprep.subr.mxu0 %v804
        %1173 = vmatpush1.msra.mxu0 %v803
        %1174 = vmatprep.subr.mxu0 %v800
        %1175 = vmatpush1.msra.mxu0 %v799
        %1176 = vmatprep.subr.mxu0 %v796
        %1177 = vmatpush1.msra.mxu0 %v795
        %1178 = vmatprep.subr.mxu0 %v792
        %1179 = vmatpush1.msra.mxu0 %v791
        %1180 = vmatprep.subr.mxu0 %v788
        %1181 = vmatpush1.msra.mxu0 %v787
        %1182 = vmatprep.subr.mxu0 %v912
        %1183 = vmatpush2.msra.mxu0 %v911
        %1184 = vmatprep.subr.mxu0 %v908
        %1185 = vmatpush2.msra.mxu0 %v907
        %1186 = vmatprep.subr.mxu0 %v904
        %1187 = vmatpush2.msra.mxu0 %v903
        %1188 = vmatprep.subr.mxu0 %v900
        %1189 = vmatpush2.msra.mxu0 %v899
        %1190 = vmatprep.subr.mxu0 %v896
        %1191 = vmatpush2.msra.mxu0 %v895
        %1192 = vmatprep.subr.mxu0 %v892
        %1193 = vmatpush2.msra.mxu0 %v891
        %1194 = vmatprep.subr.mxu0 %v888
        %1195 = vmatpush2.msra.mxu0 %v887
        %1196 = vmatprep.subr.mxu0 %v884
        %1197 = vmatpush2.msra.mxu0 %v883
        %1198 = vmatprep.subr.mxu0 %v880
        %1199 = vmatpush2.msra.mxu0 %v879
        %1200 = vmatprep.subr.mxu0 %v876
        %1201 = vmatpush2.msra.mxu0 %v875
        %1202 = vmatprep.subr.mxu0 %v872
        %1203 = vmatpush2.msra.mxu0 %v871
        %1204 = vmatprep.subr.mxu0 %v868
        %1205 = vmatpush2.msra.mxu0 %v867
        %1206 = vmatprep.subr.mxu0 %v864
        %1207 = vmatpush2.msra.mxu0 %v863
        %1208 = vmatprep.subr.mxu0 %v860
        %1209 = vmatpush2.msra.mxu0 %v859
        %1210 = vmatprep.subr.mxu0 %v856
        %1211 = vmatpush2.msra.mxu0 %v855
        %1212 = vmatprep.subr.mxu0 %v852
        %1213 = vmatpush2.msra.mxu0 %v851
        %1214 = vmatprep.mubr.f32.mxu0 %v402
        %1215 = vmatmul.mubr.f32.gmra.mxu0 %v401
        %v1216 = vpop.f32.mrf.mxu0
        %v1217 = vadd.f32 %v1146, %v1216
        %v1218 = vpop.f32.mrf.mxu0
        %v1219 = vadd.f32 %v1148, %v1218
        %1220 = vdwg.mxu0
        %1221 = vmatprep.subr.mxu0 %v466
        %1222 = vmatpush1.msra.mxu0 %v465
        %1223 = vmatprep.subr.mxu0 %v462
        %1224 = vmatpush1.msra.mxu0 %v461
        %1225 = vmatprep.subr.mxu0 %v458
        %1226 = vmatpush1.msra.mxu0 %v457
        %1227 = vmatprep.subr.mxu0 %v454
        %1228 = vmatpush1.msra.mxu0 %v453
        %1229 = vmatprep.subr.mxu0 %v450
        %1230 = vmatpush1.msra.mxu0 %v449
        %1231 = vmatprep.subr.mxu0 %v446
        %1232 = vmatpush1.msra.mxu0 %v445
        %1233 = vmatprep.subr.mxu0 %v442
        %1234 = vmatpush1.msra.mxu0 %v441
        %1235 = vmatprep.subr.mxu0 %v438
        %1236 = vmatpush1.msra.mxu0 %v437
        %1237 = vmatprep.subr.mxu0 %v434
        %1238 = vmatpush1.msra.mxu0 %v433
        %1239 = vmatprep.subr.mxu0 %v430
        %1240 = vmatpush1.msra.mxu0 %v429
        %1241 = vmatprep.subr.mxu0 %v426
        %1242 = vmatpush1.msra.mxu0 %v425
        %1243 = vmatprep.subr.mxu0 %v422
        %1244 = vmatpush1.msra.mxu0 %v421
        %1245 = vmatprep.subr.mxu0 %v418
        %1246 = vmatpush1.msra.mxu0 %v417
        %1247 = vmatprep.subr.mxu0 %v414
        %1248 = vmatpush1.msra.mxu0 %v413
        %1249 = vmatprep.subr.mxu0 %v410
        %1250 = vmatpush1.msra.mxu0 %v409
        %1251 = vmatprep.subr.mxu0 %v406
        %1252 = vmatpush1.msra.mxu0 %v405
        %1253 = vmatprep.subr.mxu0 %v530
        %1254 = vmatpush2.msra.mxu0 %v529
        %1255 = vmatprep.subr.mxu0 %v526
        %1256 = vmatpush2.msra.mxu0 %v525
        %1257 = vmatprep.subr.mxu0 %v522
        %1258 = vmatpush2.msra.mxu0 %v521
        %1259 = vmatprep.subr.mxu0 %v518
        %1260 = vmatpush2.msra.mxu0 %v517
        %1261 = vmatprep.subr.mxu0 %v514
        %1262 = vmatpush2.msra.mxu0 %v513
        %1263 = vmatprep.subr.mxu0 %v510
        %1264 = vmatpush2.msra.mxu0 %v509
        %1265 = vmatprep.subr.mxu0 %v506
        %1266 = vmatpush2.msra.mxu0 %v505
        %1267 = vmatprep.subr.mxu0 %v502
        %1268 = vmatpush2.msra.mxu0 %v501
        %1269 = vmatprep.subr.mxu0 %v498
        %1270 = vmatpush2.msra.mxu0 %v497
        %1271 = vmatprep.subr.mxu0 %v494
        %1272 = vmatpush2.msra.mxu0 %v493
        %1273 = vmatprep.subr.mxu0 %v490
        %1274 = vmatpush2.msra.mxu0 %v489
        %1275 = vmatprep.subr.mxu0 %v486
        %1276 = vmatpush2.msra.mxu0 %v485
        %1277 = vmatprep.subr.mxu0 %v482
        %1278 = vmatpush2.msra.mxu0 %v481
        %1279 = vmatprep.subr.mxu0 %v478
        %1280 = vmatpush2.msra.mxu0 %v477
        %1281 = vmatprep.subr.mxu0 %v474
        %1282 = vmatpush2.msra.mxu0 %v473
        %1283 = vmatprep.subr.mxu0 %v470
        %1284 = vmatpush2.msra.mxu0 %v469
        %1285 = vmatprep.mubr.f32.mxu0 %v396
        %1286 = vmatmul.mubr.f32.gmra.mxu0 %v395
        %v1287 = vpop.f32.mrf.mxu0
        %v1288 = vadd.f32 %v928, %v1287
        %v1289 = vpop.f32.mrf.mxu0
        %v1290 = vadd.f32 %v932, %v1289
        %1291 = vdwg.mxu0
        %1292 = vmatprep.subr.mxu0 %v594
        %1293 = vmatpush1.msra.mxu0 %v593
        %1294 = vmatprep.subr.mxu0 %v590
        %1295 = vmatpush1.msra.mxu0 %v589
        %1296 = vmatprep.subr.mxu0 %v586
        %1297 = vmatpush1.msra.mxu0 %v585
        %1298 = vmatprep.subr.mxu0 %v582
        %1299 = vmatpush1.msra.mxu0 %v581
        %1300 = vmatprep.subr.mxu0 %v578
        %1301 = vmatpush1.msra.mxu0 %v577
        %1302 = vmatprep.subr.mxu0 %v574
        %1303 = vmatpush1.msra.mxu0 %v573
        %1304 = vmatprep.subr.mxu0 %v570
        %1305 = vmatpush1.msra.mxu0 %v569
        %1306 = vmatprep.subr.mxu0 %v566
        %1307 = vmatpush1.msra.mxu0 %v565
        %1308 = vmatprep.subr.mxu0 %v562
        %1309 = vmatpush1.msra.mxu0 %v561
        %1310 = vmatprep.subr.mxu0 %v558
        %1311 = vmatpush1.msra.mxu0 %v557
        %1312 = vmatprep.subr.mxu0 %v554
        %1313 = vmatpush1.msra.mxu0 %v553
        %1314 = vmatprep.subr.mxu0 %v550
        %1315 = vmatpush1.msra.mxu0 %v549
        %1316 = vmatprep.subr.mxu0 %v546
        %1317 = vmatpush1.msra.mxu0 %v545
        %1318 = vmatprep.subr.mxu0 %v542
        %1319 = vmatpush1.msra.mxu0 %v541
        %1320 = vmatprep.subr.mxu0 %v538
        %1321 = vmatpush1.msra.mxu0 %v537
        %1322 = vmatprep.subr.mxu0 %v534
        %1323 = vmatpush1.msra.mxu0 %v533
        %1324 = vmatprep.subr.mxu0 %v658
        %1325 = vmatpush2.msra.mxu0 %v657
        %1326 = vmatprep.subr.mxu0 %v654
        %1327 = vmatpush2.msra.mxu0 %v653
        %1328 = vmatprep.subr.mxu0 %v650
        %1329 = vmatpush2.msra.mxu0 %v649
        %1330 = vmatprep.subr.mxu0 %v646
        %1331 = vmatpush2.msra.mxu0 %v645
        %1332 = vmatprep.subr.mxu0 %v642
        %1333 = vmatpush2.msra.mxu0 %v641
        %1334 = vmatprep.subr.mxu0 %v638
        %1335 = vmatpush2.msra.mxu0 %v637
        %1336 = vmatprep.subr.mxu0 %v634
        %1337 = vmatpush2.msra.mxu0 %v633
        %1338 = vmatprep.subr.mxu0 %v630
        %1339 = vmatpush2.msra.mxu0 %v629
        %1340 = vmatprep.subr.mxu0 %v626
        %1341 = vmatpush2.msra.mxu0 %v625
        %1342 = vmatprep.subr.mxu0 %v622
        %1343 = vmatpush2.msra.mxu0 %v621
        %1344 = vmatprep.subr.mxu0 %v618
        %1345 = vmatpush2.msra.mxu0 %v617
        %1346 = vmatprep.subr.mxu0 %v614
        %1347 = vmatpush2.msra.mxu0 %v613
        %1348 = vmatprep.subr.mxu0 %v610
        %1349 = vmatpush2.msra.mxu0 %v609
        %1350 = vmatprep.subr.mxu0 %v606
        %1351 = vmatpush2.msra.mxu0 %v605
        %1352 = vmatprep.subr.mxu0 %v602
        %1353 = vmatpush2.msra.mxu0 %v601
        %1354 = vmatprep.subr.mxu0 %v598
        %1355 = vmatpush2.msra.mxu0 %v597
        %1356 = vmatprep.mubr.f32.mxu0 %v398
        %1357 = vmatmul.mubr.f32.gmra.mxu0 %v397
        %v1358 = vpop.f32.mrf.mxu0
        %v1359 = vadd.f32 %v1288, %v1358
        %v1360 = vpop.f32.mrf.mxu0
        %v1361 = vadd.f32 %v1290, %v1360
        %1362 = vdwg.mxu0
        %1363 = vmatprep.subr.mxu0 %v722
        %1364 = vmatpush1.msra.mxu0 %v721
        %1365 = vmatprep.subr.mxu0 %v718
        %1366 = vmatpush1.msra.mxu0 %v717
        %1367 = vmatprep.subr.mxu0 %v714
        %1368 = vmatpush1.msra.mxu0 %v713
        %1369 = vmatprep.subr.mxu0 %v710
        %1370 = vmatpush1.msra.mxu0 %v709
        %1371 = vmatprep.subr.mxu0 %v706
        %1372 = vmatpush1.msra.mxu0 %v705
        %1373 = vmatprep.subr.mxu0 %v702
        %1374 = vmatpush1.msra.mxu0 %v701
        %1375 = vmatprep.subr.mxu0 %v698
        %1376 = vmatpush1.msra.mxu0 %v697
        %1377 = vmatprep.subr.mxu0 %v694
        %1378 = vmatpush1.msra.mxu0 %v693
        %1379 = vmatprep.subr.mxu0 %v690
        %1380 = vmatpush1.msra.mxu0 %v689
        %1381 = vmatprep.subr.mxu0 %v686
        %1382 = vmatpush1.msra.mxu0 %v685
        %1383 = vmatprep.subr.mxu0 %v682
        %1384 = vmatpush1.msra.mxu0 %v681
        %1385 = vmatprep.subr.mxu0 %v678
        %1386 = vmatpush1.msra.mxu0 %v677
        %1387 = vmatprep.subr.mxu0 %v674
        %1388 = vmatpush1.msra.mxu0 %v673
        %1389 = vmatprep.subr.mxu0 %v670
        %1390 = vmatpush1.msra.mxu0 %v669
        %1391 = vmatprep.subr.mxu0 %v666
        %1392 = vmatpush1.msra.mxu0 %v665
        %1393 = vmatprep.subr.mxu0 %v662
        %1394 = vmatpush1.msra.mxu0 %v661
        %1395 = vmatprep.subr.mxu0 %v786
        %1396 = vmatpush2.msra.mxu0 %v785
        %1397 = vmatprep.subr.mxu0 %v782
        %1398 = vmatpush2.msra.mxu0 %v781
        %1399 = vmatprep.subr.mxu0 %v778
        %1400 = vmatpush2.msra.mxu0 %v777
        %1401 = vmatprep.subr.mxu0 %v774
        %1402 = vmatpush2.msra.mxu0 %v773
        %1403 = vmatprep.subr.mxu0 %v770
        %1404 = vmatpush2.msra.mxu0 %v769
        %1405 = vmatprep.subr.mxu0 %v766
        %1406 = vmatpush2.msra.mxu0 %v765
        %1407 = vmatprep.subr.mxu0 %v762
        %1408 = vmatpush2.msra.mxu0 %v761
        %1409 = vmatprep.subr.mxu0 %v758
        %1410 = vmatpush2.msra.mxu0 %v757
        %1411 = vmatprep.subr.mxu0 %v754
        %1412 = vmatpush2.msra.mxu0 %v753
        %1413 = vmatprep.subr.mxu0 %v750
        %1414 = vmatpush2.msra.mxu0 %v749
        %1415 = vmatprep.subr.mxu0 %v746
        %1416 = vmatpush2.msra.mxu0 %v745
        %1417 = vmatprep.subr.mxu0 %v742
        %1418 = vmatpush2.msra.mxu0 %v741
        %1419 = vmatprep.subr.mxu0 %v738
        %1420 = vmatpush2.msra.mxu0 %v737
        %1421 = vmatprep.subr.mxu0 %v734
        %1422 = vmatpush2.msra.mxu0 %v733
        %1423 = vmatprep.subr.mxu0 %v730
        %1424 = vmatpush2.msra.mxu0 %v729
        %1425 = vmatprep.subr.mxu0 %v726
        %1426 = vmatpush2.msra.mxu0 %v725
        %1427 = vmatprep.mubr.f32.mxu0 %v400
        %1428 = vmatmul.mubr.f32.gmra.mxu0 %v399
        %v1429 = vpop.f32.mrf.mxu0
        %v1430 = vadd.f32 %v1359, %v1429
        %v1431 = vpop.f32.mrf.mxu0
        %v1432 = vadd.f32 %v1361, %v1431
        %1433 = vdwg.mxu0
        %1434 = vmatprep.subr.mxu0 %v850
        %1435 = vmatpush1.msra.mxu0 %v849
        %1436 = vmatprep.subr.mxu0 %v846
        %1437 = vmatpush1.msra.mxu0 %v845
        %1438 = vmatprep.subr.mxu0 %v842
        %1439 = vmatpush1.msra.mxu0 %v841
        %1440 = vmatprep.subr.mxu0 %v838
        %1441 = vmatpush1.msra.mxu0 %v837
        %1442 = vmatprep.subr.mxu0 %v834
        %1443 = vmatpush1.msra.mxu0 %v833
        %1444 = vmatprep.subr.mxu0 %v830
        %1445 = vmatpush1.msra.mxu0 %v829
        %1446 = vmatprep.subr.mxu0 %v826
        %1447 = vmatpush1.msra.mxu0 %v825
        %1448 = vmatprep.subr.mxu0 %v822
        %1449 = vmatpush1.msra.mxu0 %v821
        %1450 = vmatprep.subr.mxu0 %v818
        %1451 = vmatpush1.msra.mxu0 %v817
        %1452 = vmatprep.subr.mxu0 %v814
        %1453 = vmatpush1.msra.mxu0 %v813
        %1454 = vmatprep.subr.mxu0 %v810
        %1455 = vmatpush1.msra.mxu0 %v809
        %1456 = vmatprep.subr.mxu0 %v806
        %1457 = vmatpush1.msra.mxu0 %v805
        %1458 = vmatprep.subr.mxu0 %v802
        %1459 = vmatpush1.msra.mxu0 %v801
        %1460 = vmatprep.subr.mxu0 %v798
        %1461 = vmatpush1.msra.mxu0 %v797
        %1462 = vmatprep.subr.mxu0 %v794
        %1463 = vmatpush1.msra.mxu0 %v793
        %1464 = vmatprep.subr.mxu0 %v790
        %1465 = vmatpush1.msra.mxu0 %v789
        %1466 = vmatprep.subr.mxu0 %v914
        %1467 = vmatpush2.msra.mxu0 %v913
        %1468 = vmatprep.subr.mxu0 %v910
        %1469 = vmatpush2.msra.mxu0 %v909
        %1470 = vmatprep.subr.mxu0 %v906
        %1471 = vmatpush2.msra.mxu0 %v905
        %1472 = vmatprep.subr.mxu0 %v902
        %1473 = vmatpush2.msra.mxu0 %v901
        %1474 = vmatprep.subr.mxu0 %v898
        %1475 = vmatpush2.msra.mxu0 %v897
        %1476 = vmatprep.subr.mxu0 %v894
        %1477 = vmatpush2.msra.mxu0 %v893
        %1478 = vmatprep.subr.mxu0 %v890
        %1479 = vmatpush2.msra.mxu0 %v889
        %1480 = vmatprep.subr.mxu0 %v886
        %1481 = vmatpush2.msra.mxu0 %v885
        %1482 = vmatprep.subr.mxu0 %v882
        %1483 = vmatpush2.msra.mxu0 %v881
        %1484 = vmatprep.subr.mxu0 %v878
        %1485 = vmatpush2.msra.mxu0 %v877
        %1486 = vmatprep.subr.mxu0 %v874
        %1487 = vmatpush2.msra.mxu0 %v873
        %1488 = vmatprep.subr.mxu0 %v870
        %1489 = vmatpush2.msra.mxu0 %v869
        %1490 = vmatprep.subr.mxu0 %v866
        %1491 = vmatpush2.msra.mxu0 %v865
        %1492 = vmatprep.subr.mxu0 %v862
        %1493 = vmatpush2.msra.mxu0 %v861
        %1494 = vmatprep.subr.mxu0 %v858
        %1495 = vmatpush2.msra.mxu0 %v857
        %1496 = vmatprep.subr.mxu0 %v854
        %1497 = vmatpush2.msra.mxu0 %v853
        %1498 = vmatprep.mubr.f32.mxu0 %v402
        %1499 = vmatmul.mubr.f32.gmra.mxu0 %v401
        %v1500 = vpop.f32.mrf.mxu0
        %v1501 = vadd.f32 %v1430, %v1500
        %v1502 = vpop.f32.mrf.mxu0
        %v1503 = vadd.f32 %v1432, %v1502
        %1504 = vdwg.mxu0
        %v1505 = vld [vmem:[%s339] sm:$0xf]
        %v1506 = vmul.f32 %v1505, 0.01
        %v1507 = vld [vmem:[%s348] sm:$0xff]
        %v1508 = vld [vmem:[%s348 + $0x8] sm:$0xff]
        %v1509 = vld [vmem:[%s348 + $0x10] sm:$0xff]
        %v1510 = vld [vmem:[%s348 + $0x18] sm:$0xff]
        %v1512 = vlaneseq
        %v1513 = vshrl.u32 %v1512, 7
        %v1514 = vsub.s32 0, %v1513
        %v1515 = vrot.slane %v1506, %v1514
        %v1516 = vlaneseq
        %v1517 = vshrl.u32 %v1516, 7
        %v1518 = vsub.s32 1, %v1517
        %v1519 = vrot.slane %v1506, %v1518
        %v1520 = vlaneseq
        %v1521 = vshrl.u32 %v1520, 7
        %v1522 = vsub.s32 2, %v1521
        %v1523 = vrot.slane %v1506, %v1522
        %v1524 = vlaneseq
        %v1525 = vshrl.u32 %v1524, 7
        %v1526 = vsub.s32 3, %v1525
        %v1527 = vrot.slane %v1506, %v1526
        %v1532 = vmul.f32 %v1515, %v1507
        %v1533 = vmul.f32 %v1519, %v1508
        %v1534 = vmul.f32 %v1523, %v1509
        %v1535 = vmul.f32 %v1527, %v1510
        %v1536 = vadd.f32 %v1217, %v1532
        %v1537 = vadd.f32 %v1219, %v1533
        %v1538 = vadd.f32 %v1501, %v1534
        %v1539 = vadd.f32 %v1503, %v1535
        %1540 = vst [vmem:[%s389] sm:$0xff] %v1536
        %1541 = vst [vmem:[%s389 + $0x8] sm:$0xff] %v1537
        %1542 = vst [vmem:[%s389 + $0x10] sm:$0xff] %v1538
        %1543 = vst [vmem:[%s389 + $0x18] sm:$0xff] %v1539
        %s1544 = sand.u32 %s180, 1
        %s1545 = scalar_lea.sflag [#allocation4], %s1544
        %s1546 = sand.u32 %s180, 1
        %s1547 = smul.addr %s1546, 32
        %s1548 = scalar_lea.vmem [#allocation11], %s1547
        // Predicated region
        $region61: #{tpu_custom_call.1} parent=39 // pred_check
          %p1549 = pneg %p190
        $region62: #{tpu_custom_call.1} parent=39 // pred_check_branch
          %1551 = sbr.rel (%p1549) target = $region64
        $region63: #{tpu_custom_call.1} parent=39 // pred_region
          %s1552 = smul.u32 4, %s31
          %s1554 = ssub.s32 512, 512
          %1555 = vsyncadd %s1545, %s1554
          %s1556 = smul.addr %s30, 8
          %s1557 = sadd.s32 %s1552, %s1556
          %s1558 = smul.addr %s1557, 128
          %s1559 = scalar_lea.hbm %s5, %s1558
          %s1561 = sshll.u32 %s1548, 4
          %s1562 = int_to_ptr.vmem [resolvable:$true] %s1561
          %1564 = dma.vmem_to_hbm [thread:$0]  %s1562, 512, %s1559, %s1545
        $region64: #{tpu_custom_call.1} parent=39 // pred_fallthru
          _
      $region40: #{tpu_custom_call.1} parent=5 // pred_fallthru
        _
      %p1565 = scmp.le.s32.totalorder 2, %s21
      // Predicated region
      $region65: #{tpu_custom_call.1} parent=5 // pred_check
        %p1566 = pneg %p1565
      $region66: #{tpu_custom_call.1} parent=5 // pred_check_branch
        %1568 = sbr.rel (%p1566) target = $region68
      $region67: #{tpu_custom_call.1} parent=5 // pred_region
        %s1569 = ssub.s32 %s21, 2
        // Predicated region
        $region69: #{tpu_custom_call.1} parent=67 // pred_check
          %p1570 = pneg %p196
        $region70: #{tpu_custom_call.1} parent=67 // pred_check_branch
          %1572 = sbr.rel (%p1570) target = $region72
        $region71: #{tpu_custom_call.1} parent=67 // pred_region
          %s1573 = sand.u32 %s181, 1
          %s1574 = scalar_lea.sflag [#allocation4], %s1573
          %s1575 = sand.u32 %s181, 1
          %s1576 = smul.addr %s1575, 32
          %s1577 = scalar_lea.vmem [#allocation11], %s1576
          %1578 = dma.done %s1574, 512
        $region72: #{tpu_custom_call.1} parent=67 // pred_fallthru
          _
      $region68: #{tpu_custom_call.1} parent=5 // pred_fallthru
        _
    $region6: #{tpu_custom_call.1} parent=1 // loop_footer
      %s25 = sadd.s32 1, %s21
    $region7: #{tpu_custom_call.1} parent=1 // loop_footer_branch
      %20 = sbr.rel target = $region3
    $region8: #{tpu_custom_call.1} parent=1 // loop_exit
      _
    %1579 = vsyncpa [#allocation3], 1
    %s1580 = scalar_lea.sflag [#allocation3], 1
    %1581 = vsyncpa %s1580, 1
    %1582 = vsyncpa [#allocation6], 1
    %s1583 = scalar_lea.sflag [#allocation6], 1
    %1584 = vsyncpa %s1583, 1
    %1585 = vsyncpa [#allocation9], 1
    %s1586 = scalar_lea.sflag [#allocation9], 1
    %1587 = vsyncpa %s1586, 1
    %1588 = vsyncpa [#allocation4], 1
    %s1589 = scalar_lea.sflag [#allocation4], 1
    %1590 = vsyncpa %s1589, 1

</llo_original>
